<compile_context>
chip_gen: v7x
topology: tpu7x:2x2x1
jax: 0.10.0
libtpu: 0.0.40
codegen_flags: <defaults>
</compile_context>

<pallas_src>
import functools

import jax
import jax.numpy as jnp
from jax.experimental import pallas as pl
from jax.experimental.pallas import tpu as pltpu


def _cdiv(a, b):
    return -(-a // b)


def _round_up(v, m):
    return _cdiv(v, m) * m


# ---------------------------------------------------------------------------
# Packed parameter block: one small f32 array, constant index_map -> loaded
# into VMEM once and resident across every grid step.  Columns are aligned to
# 128 lanes so each weight sub-block starts at lane 0 of a vreg.
# ---------------------------------------------------------------------------
def _param_layout(C, hid):
    colw = max(128, _round_up(hid, 128), _round_up(C, 128))
    r1 = _round_up(C, 8)              # rows holding [g1_w | w1_w]
    r2 = _round_up(hid, 8)            # rows holding [g2_w | w2_w]
    off_b1 = r1                       # row holding  [g1_b | w1_b]
    off_w2 = r1 + 8                   # first row of [g2_w | w2_w]
    off_b2 = off_w2 + r2              # row holding  [g2_b | w2_b]
    rows = off_b2 + 8
    cols = 2 * colw
    return rows, cols, colw, off_b1, off_w2, off_b2


def _pack_params(params, C, hid):
    rows, cols, colw, off_b1, off_w2, off_b2 = _param_layout(C, hid)
    P = jnp.zeros((rows, cols), jnp.float32)
    P = P.at[0:C, 0:hid].set(params["g1_w"].astype(jnp.float32))
    P = P.at[0:C, colw:colw + hid].set(params["w1_w"].astype(jnp.float32))
    P = P.at[off_b1, 0:hid].set(params["g1_b"].astype(jnp.float32))
    P = P.at[off_b1, colw:colw + hid].set(params["w1_b"].astype(jnp.float32))
    P = P.at[off_w2:off_w2 + hid, 0:C].set(params["g2_w"].astype(jnp.float32))
    P = P.at[off_w2:off_w2 + hid, colw:colw + C].set(params["w2_w"].astype(jnp.float32))
    P = P.at[off_b2, 0:C].set(params["g2_b"].astype(jnp.float32))
    P = P.at[off_b2, colw:colw + C].set(params["w2_b"].astype(jnp.float32))
    return P


# ---------------------------------------------------------------------------
# Per-channel sum and max over the sequence groups of a lane-dense (Bt, S*C)
# block.  Pairwise halving tree on contiguous static lane slices: exact f32,
# no pltpu.roll, works for any S (odd sizes peel the trailing group).
# ---------------------------------------------------------------------------
def _seq_sum_max(x2d, S, C):
    cur_s, cur_m, s_cur = x2d, x2d, S
    extra_s = extra_m = None
    while s_cur > 1:
        if s_cur % 2:
            ts = cur_s[:, (s_cur - 1) * C:]
            tm = cur_m[:, (s_cur - 1) * C:]
            extra_s = ts if extra_s is None else extra_s + ts
            extra_m = tm if extra_m is None else jnp.maximum(extra_m, tm)
            s_cur -= 1
            cur_s = cur_s[:, :s_cur * C]
            cur_m = cur_m[:, :s_cur * C]
        half = (s_cur // 2) * C
        cur_s = cur_s[:, :half] + cur_s[:, half:]
        cur_m = jnp.maximum(cur_m[:, :half], cur_m[:, half:])
        s_cur //= 2
    if extra_s is not None:
        cur_s = cur_s + extra_s
        cur_m = jnp.maximum(cur_m, extra_m)
    return cur_s, cur_m                                  # each (Bt, C)


def _band_attn_kernel(x_ref, p_ref, o_ref, *, S, C, hid):
    _, _, colw, off_b1, off_w2, off_b2 = _param_layout(C, hid)

    x = x_ref[...]                                       # (Bt, S*C) lane-dense
    xf = x.astype(jnp.float32)

    # ---- per-channel statistics over the sequence axis ---------------------
    ssum, smax = _seq_sum_max(xf, S, C)                  # (Bt, C)
    comb = 0.5 * (ssum * (1.0 / S) + smax)

    # ---- packed weights: static sub-block loads (block is VMEM-resident) ---
    wg1 = p_ref[0:C, 0:hid]
    ww1 = p_ref[0:C, colw:colw + hid]
    bg1 = p_ref[off_b1:off_b1 + 1, 0:hid]
    bw1 = p_ref[off_b1:off_b1 + 1, colw:colw + hid]
    wg2 = p_ref[off_w2:off_w2 + hid, 0:C]
    ww2 = p_ref[off_w2:off_w2 + hid, colw:colw + C]
    bg2 = p_ref[off_b2:off_b2 + 1, 0:C]
    bw2 = p_ref[off_b2:off_b2 + 1, colw:colw + C]

    hi = jax.lax.Precision.HIGHEST

    def leaky(h):                                        # LeakyReLU(0.2)
        return jnp.where(h > 0, h, 0.2 * h)

    # gating branch g: Linear -> LeakyReLU -> Linear -> Sigmoid
    hg = leaky(jnp.dot(comb, wg1, precision=hi,
                       preferred_element_type=jnp.float32) + bg1)
    gl = jnp.dot(hg, wg2, precision=hi,
                 preferred_element_type=jnp.float32) + bg2
    gate = 1.0 / (1.0 + jnp.exp(-gl))                    # EUP exp
    y = comb * gate

    # weighting branch w: Linear -> LeakyReLU -> Linear -> Softmax(channels)
    hw = leaky(jnp.dot(y, ww1, precision=hi,
                       preferred_element_type=jnp.float32) + bw1)
    wl = jnp.dot(hw, ww2, precision=hi,
                 preferred_element_type=jnp.float32) + bw2
    m = jnp.max(wl, axis=-1, keepdims=True)
    e = jnp.exp(wl - m)
    # exact divide keeps tight parity with the f32 reference;
    # pl.reciprocal(..., approx=True) is available if that is not required.
    att = e / jnp.sum(e, axis=-1, keepdims=True)         # (Bt, C)

    # ---- broadcast att over the S sequence groups along the lane axis ------
    # column j of the output gets att[:, j % C] (exact, no arithmetic).
    att_b = jnp.concatenate([att] * S, axis=1)           # (Bt, S*C)

    # final elementwise multiply in f32; single rounding at the store
    o_ref[...] = (xf * att_b).astype(o_ref.dtype)


def enhanced_band_attention(x, params, *, block_b=None, xla_fallback_bytes=0):
    """x: (B, S, C) with C == num_bands (channels-last, matching nn.Linear)."""
    B, S, C = x.shape
    hid = params["g1_w"].shape[1]
    N = S * C
    itemsize = jnp.dtype(x.dtype).itemsize

    # Optional tiny-input dispatch: below this many bytes of x the fixed
    # pallas_call launch cost dominates and plain XLA is preferable.
    if B * N * itemsize < xla_fallback_bytes:
        return _reference(x, params)

    P = _pack_params(params, C, hid)

    # ---- VMEM-budgeted batch tile ------------------------------------------
    # ~4 MiB of x per grid step (block_b up to 8192 rows for f32, N=128), and
    # >=2 equal 'parallel' steps whenever B >= 16 (v7x megacore).  No padding:
    # a ragged last block is handled by Pallas edge-block masking.
    if block_b is None:
        target_bytes = 4 << 20
        nsteps = max(1, _cdiv(B * N * itemsize, target_bytes))
        if B >= 16:
            nsteps = max(nsteps, 2)
        block_b = _cdiv(B, nsteps)
    block_b = max(1, min(int(block_b), B))
    if block_b < B:
        block_b = min(_round_up(block_b, 8), B)          # mult of 8 or full dim

    grid = (_cdiv(B, block_b),)
    x_flat = x.reshape(B, N)                             # free reshape in XLA

    block_bytes = block_b * N * itemsize
    vmem_need = 4 * block_bytes + 2 * P.size * 4 + (2 << 20)
    vmem_limit = int(min(max(vmem_need, 32 << 20), 64 << 20))

    cost = pl.CostEstimate(
        flops=int(8 * B * C * hid + 4 * B * N),
        transcendentals=int(2 * B * C),
        bytes_accessed=int(2 * B * N * itemsize + P.size * 4),
    )

    kern = functools.partial(_band_attn_kernel, S=S, C=C, hid=hid)

    out_flat = pl.pallas_call(
        kern,
        out_shape=jax.ShapeDtypeStruct((B, N), x.dtype),
        grid_spec=pltpu.PrefetchScalarGridSpec(
            num_scalar_prefetch=0,
            grid=grid,
            in_specs=[
                pl.BlockSpec((block_b, N), lambda i: (i, 0)),
                # packed weight block, constant index -> DMA'd once, resident
                pl.BlockSpec(P.shape, lambda i: (0, 0)),
            ],
            out_specs=pl.BlockSpec((block_b, N), lambda i: (i, 0)),
        ),
        compiler_params=pltpu.CompilerParams(
            dimension_semantics=("parallel",),
            vmem_limit_bytes=vmem_limit,
        ),
        cost_estimate=cost,
    )(x_flat, P)

    return out_flat.reshape(B, S, C)


def init_params(key, num_bands, hid=32):
    # Deterministic synthetic init (PyTorch-Linear-style uniform bounds),
    # stored as (in, out) so the forward does inp @ W + b directly.
    ks = jax.random.split(key, 8)

    def lin(kw, kb, fan_in, fan_out):
        bound = 1.0 / jnp.sqrt(fan_in)
        w = jax.random.uniform(kw, (fan_in, fan_out), jnp.float32, -bound, bound)
        b = jax.random.uniform(kb, (fan_out,), jnp.float32, -bound, bound)
        return w, b

    w1_w, w1_b = lin(ks[0], ks[1], num_bands, hid)
    w2_w, w2_b = lin(ks[2], ks[3], hid, num_bands)
    g1_w, g1_b = lin(ks[4], ks[5], num_bands, hid)
    g2_w, g2_b = lin(ks[6], ks[7], hid, num_bands)
    return dict(w1_w=w1_w, w1_b=w1_b, w2_w=w2_w, w2_b=w2_b,
                g1_w=g1_w, g1_b=g1_b, g2_w=g2_w, g2_b=g2_b)


def _reference(x, p):
    # pure-JAX reference of the torch forward, for correctness checks
    comb = 0.5 * (x.mean(axis=1) + x.max(axis=1))

    def mlp(inp, w1, b1, w2, b2):
        h = inp @ w1 + b1
        h = jnp.where(h > 0, h, 0.2 * h)
        return h @ w2 + b2

    gate = jax.nn.sigmoid(mlp(comb, p["g1_w"], p["g1_b"], p["g2_w"], p["g2_b"]))
    att = jax.nn.softmax(
        mlp(comb * gate, p["w1_w"], p["w1_b"], p["w2_w"], p["w2_b"]), axis=1)
    return x * att[:, None, :]


if __name__ == "__main__":
    # Full-f32 matmul precision for the pure-JAX reference (the kernel's tiny
    # dots already request Precision.HIGHEST explicitly).
    jax.config.update("jax_default_matmul_precision", "highest")

    key = jax.random.PRNGKey(0)
    k_x1, k_x2, k_x3, k_p = jax.random.split(key, 4)

    num_bands, hid = 8, 32
    params = init_params(k_p, num_bands, hid)

    def check(x, tag):
        out = jax.block_until_ready(enhanced_band_attention(x, params))
        ref = _reference(x, params)
        assert out.shape == x.shape, f"{tag}: shape mismatch"
        # tolerance leaves headroom for MXU pass-precision differences
        assert bool(jnp.allclose(out, ref, atol=2e-3, rtol=2e-3)), \
            f"{tag}: mismatch vs reference"

    # 1) module's minimal example: B=2, S=16, C=8 -> single (2, 128) block
    check(jax.random.normal(k_x1, (2, 16, num_bands), jnp.float32), "small")

    # 2) batched path: B=256 -> block_b=128, two 'parallel' grid steps
    check(jax.random.normal(k_x2, (256, 16, num_bands), jnp.float32), "batched")

    # 3) non-power-of-two sequence length: S=12 (N=96), B=16 -> block_b=8
    check(jax.random.normal(k_x3, (16, 12, num_bands), jnp.float32), "odd-S")

    print("KERNEL_OK")
</pallas_src>

<mosaic_0001>
module attributes {stable_mosaic.version = 11 : i64} {
  func.func @_band_attn_kernel(%arg0: i32, %arg1: memref<2x128xf32, #tpu.memory_space<vmem>>, %arg2: memref<56x256xf32, #tpu.memory_space<vmem>>, %arg3: memref<2x128xf32, #tpu.memory_space<vmem>>) attributes {dimension_semantics = [#tpu.dimension_semantics<parallel>], iteration_bounds = array<i64: 1>, scalar_prefetch = 0 : i64, scratch_operands = 0 : i64, tpu.core_type = #tpu.core_type<tc>, window_params = [{transform_indices = @transform_0, window_bounds = array<i64: 2, 128>}, {pipeline_mode = #tpu.pipeline_mode<synchronous>, transform_indices = @transform_1, window_bounds = array<i64: 56, 256>}, {transform_indices = @transform_2, window_bounds = array<i64: 2, 128>}]} {
    %c0 = arith.constant 0 : index
    %c0_0 = arith.constant 0 : index
    %0 = vector.load %arg1[%c0, %c0_0] : memref<2x128xf32, #tpu.memory_space<vmem>>, vector<2x128xf32>
    %1 = vector.extract_strided_slice %0 {offsets = [0, 0], sizes = [2, 64], strides = [1, 1]} : vector<2x128xf32> to vector<2x64xf32>
    %2 = vector.extract_strided_slice %0 {offsets = [0, 64], sizes = [2, 64], strides = [1, 1]} : vector<2x128xf32> to vector<2x64xf32>
    %3 = arith.addf %1, %2 : vector<2x64xf32>
    %4 = vector.extract_strided_slice %0 {offsets = [0, 0], sizes = [2, 64], strides = [1, 1]} : vector<2x128xf32> to vector<2x64xf32>
    %5 = vector.extract_strided_slice %0 {offsets = [0, 64], sizes = [2, 64], strides = [1, 1]} : vector<2x128xf32> to vector<2x64xf32>
    %6 = arith.maximumf %4, %5 : vector<2x64xf32>
    %7 = vector.extract_strided_slice %3 {offsets = [0, 0], sizes = [2, 32], strides = [1, 1]} : vector<2x64xf32> to vector<2x32xf32>
    %8 = vector.extract_strided_slice %3 {offsets = [0, 32], sizes = [2, 32], strides = [1, 1]} : vector<2x64xf32> to vector<2x32xf32>
    %9 = arith.addf %7, %8 : vector<2x32xf32>
    %10 = vector.extract_strided_slice %6 {offsets = [0, 0], sizes = [2, 32], strides = [1, 1]} : vector<2x64xf32> to vector<2x32xf32>
    %11 = vector.extract_strided_slice %6 {offsets = [0, 32], sizes = [2, 32], strides = [1, 1]} : vector<2x64xf32> to vector<2x32xf32>
    %12 = arith.maximumf %10, %11 : vector<2x32xf32>
    %13 = vector.extract_strided_slice %9 {offsets = [0, 0], sizes = [2, 16], strides = [1, 1]} : vector<2x32xf32> to vector<2x16xf32>
    %14 = vector.extract_strided_slice %9 {offsets = [0, 16], sizes = [2, 16], strides = [1, 1]} : vector<2x32xf32> to vector<2x16xf32>
    %15 = arith.addf %13, %14 : vector<2x16xf32>
    %16 = vector.extract_strided_slice %12 {offsets = [0, 0], sizes = [2, 16], strides = [1, 1]} : vector<2x32xf32> to vector<2x16xf32>
    %17 = vector.extract_strided_slice %12 {offsets = [0, 16], sizes = [2, 16], strides = [1, 1]} : vector<2x32xf32> to vector<2x16xf32>
    %18 = arith.maximumf %16, %17 : vector<2x16xf32>
    %19 = vector.extract_strided_slice %15 {offsets = [0, 0], sizes = [2, 8], strides = [1, 1]} : vector<2x16xf32> to vector<2x8xf32>
    %20 = vector.extract_strided_slice %15 {offsets = [0, 8], sizes = [2, 8], strides = [1, 1]} : vector<2x16xf32> to vector<2x8xf32>
    %21 = arith.addf %19, %20 : vector<2x8xf32>
    %22 = vector.extract_strided_slice %18 {offsets = [0, 0], sizes = [2, 8], strides = [1, 1]} : vector<2x16xf32> to vector<2x8xf32>
    %23 = vector.extract_strided_slice %18 {offsets = [0, 8], sizes = [2, 8], strides = [1, 1]} : vector<2x16xf32> to vector<2x8xf32>
    %24 = arith.maximumf %22, %23 : vector<2x8xf32>
    %cst = arith.constant 6.250000e-02 : f32
    %25 = vector.broadcast %cst : f32 to vector<2x8xf32>
    %26 = arith.mulf %21, %25 : vector<2x8xf32>
    %27 = arith.addf %26, %24 : vector<2x8xf32>
    %cst_1 = arith.constant 5.000000e-01 : f32
    %28 = vector.broadcast %cst_1 : f32 to vector<2x8xf32>
    %29 = arith.mulf %28, %27 : vector<2x8xf32>
    %c0_2 = arith.constant 0 : index
    %c0_3 = arith.constant 0 : index
    %30 = vector.load %arg2[%c0_2, %c0_3] : memref<56x256xf32, #tpu.memory_space<vmem>>, vector<8x32xf32>
    %c0_4 = arith.constant 0 : index
    %c128 = arith.constant 128 : index
    %31 = vector.load %arg2[%c0_4, %c128] : memref<56x256xf32, #tpu.memory_space<vmem>>, vector<8x32xf32>
    %c8 = arith.constant 8 : index
    %c0_5 = arith.constant 0 : index
    %32 = vector.load %arg2[%c8, %c0_5] : memref<56x256xf32, #tpu.memory_space<vmem>>, vector<1x32xf32>
    %c8_6 = arith.constant 8 : index
    %c128_7 = arith.constant 128 : index
    %33 = vector.load %arg2[%c8_6, %c128_7] : memref<56x256xf32, #tpu.memory_space<vmem>>, vector<1x32xf32>
    %c16 = arith.constant 16 : index
    %c0_8 = arith.constant 0 : index
    %34 = vector.load %arg2[%c16, %c0_8] : memref<56x256xf32, #tpu.memory_space<vmem>>, vector<32x8xf32>
    %c16_9 = arith.constant 16 : index
    %c128_10 = arith.constant 128 : index
    %35 = vector.load %arg2[%c16_9, %c128_10] : memref<56x256xf32, #tpu.memory_space<vmem>>, vector<32x8xf32>
    %c48 = arith.constant 48 : index
    %c0_11 = arith.constant 0 : index
    %36 = vector.load %arg2[%c48, %c0_11] : memref<56x256xf32, #tpu.memory_space<vmem>>, vector<1x8xf32>
    %c48_12 = arith.constant 48 : index
    %c128_13 = arith.constant 128 : index
    %37 = vector.load %arg2[%c48_12, %c128_13] : memref<56x256xf32, #tpu.memory_space<vmem>>, vector<1x8xf32>
    %cst_14 = arith.constant dense<0.000000e+00> : vector<2x32xf32>
    %38 = tpu.matmul %29, %30, %cst_14 {dimension_numbers = #tpu.dot_dimension_numbers<[1], [0], [0], [1], [0, 0, 1, 1], [], []>, precision = #tpu.contract_precision<fp32>} : vector<2x8xf32>, vector<8x32xf32>, vector<2x32xf32> -> vector<2x32xf32>
    %39 = vector.broadcast %32 : vector<1x32xf32> to vector<2x32xf32>
    %40 = arith.addf %38, %39 : vector<2x32xf32>
    %cst_15 = arith.constant 0.000000e+00 : f32
    %41 = vector.broadcast %cst_15 : f32 to vector<2x32xf32>
    %42 = arith.cmpf ogt, %40, %41 : vector<2x32xf32>
    %cst_16 = arith.constant 2.000000e-01 : f32
    %43 = vector.broadcast %cst_16 : f32 to vector<2x32xf32>
    %44 = arith.mulf %43, %40 : vector<2x32xf32>
    %45 = arith.select %42, %40, %44 : vector<2x32xi1>, vector<2x32xf32>
    %cst_17 = arith.constant dense<0.000000e+00> : vector<2x8xf32>
    %46 = tpu.matmul %45, %34, %cst_17 {dimension_numbers = #tpu.dot_dimension_numbers<[1], [0], [0], [1], [0, 0, 1, 1], [], []>, precision = #tpu.contract_precision<fp32>} : vector<2x32xf32>, vector<32x8xf32>, vector<2x8xf32> -> vector<2x8xf32>
    %47 = vector.broadcast %36 : vector<1x8xf32> to vector<2x8xf32>
    %48 = arith.addf %46, %47 : vector<2x8xf32>
    %cst_18 = arith.constant 0.000000e+00 : f32
    %49 = vector.broadcast %cst_18 : f32 to vector<2x8xf32>
    %50 = arith.subf %49, %48 : vector<2x8xf32>
    %51 = math.exp %50 : vector<2x8xf32>
    %cst_19 = arith.constant 1.000000e+00 : f32
    %52 = vector.broadcast %cst_19 : f32 to vector<2x8xf32>
    %53 = arith.addf %52, %51 : vector<2x8xf32>
    %cst_20 = arith.constant 1.000000e+00 : f32
    %54 = vector.broadcast %cst_20 : f32 to vector<2x8xf32>
    %55 = arith.divf %54, %53 : vector<2x8xf32>
    %56 = arith.mulf %29, %55 : vector<2x8xf32>
    %cst_21 = arith.constant dense<0.000000e+00> : vector<2x32xf32>
    %57 = tpu.matmul %56, %31, %cst_21 {dimension_numbers = #tpu.dot_dimension_numbers<[1], [0], [0], [1], [0, 0, 1, 1], [], []>, precision = #tpu.contract_precision<fp32>} : vector<2x8xf32>, vector<8x32xf32>, vector<2x32xf32> -> vector<2x32xf32>
    %58 = vector.broadcast %33 : vector<1x32xf32> to vector<2x32xf32>
    %59 = arith.addf %57, %58 : vector<2x32xf32>
    %cst_22 = arith.constant 0.000000e+00 : f32
    %60 = vector.broadcast %cst_22 : f32 to vector<2x32xf32>
    %61 = arith.cmpf ogt, %59, %60 : vector<2x32xf32>
    %cst_23 = arith.constant 2.000000e-01 : f32
    %62 = vector.broadcast %cst_23 : f32 to vector<2x32xf32>
    %63 = arith.mulf %62, %59 : vector<2x32xf32>
    %64 = arith.select %61, %59, %63 : vector<2x32xi1>, vector<2x32xf32>
    %cst_24 = arith.constant dense<0.000000e+00> : vector<2x8xf32>
    %65 = tpu.matmul %64, %35, %cst_24 {dimension_numbers = #tpu.dot_dimension_numbers<[1], [0], [0], [1], [0, 0, 1, 1], [], []>, precision = #tpu.contract_precision<fp32>} : vector<2x32xf32>, vector<32x8xf32>, vector<2x8xf32> -> vector<2x8xf32>
    %66 = vector.broadcast %37 : vector<1x8xf32> to vector<2x8xf32>
    %67 = arith.addf %65, %66 : vector<2x8xf32>
    %cst_25 = arith.constant dense<0xFF800000> : vector<2xf32>
    %68 = vector.multi_reduction <maximumf>, %67, %cst_25 [1] : vector<2x8xf32> to vector<2xf32>
    %69 = vector.shape_cast %68 : vector<2xf32> to vector<2x1xf32>
    %70 = vector.broadcast %69 : vector<2x1xf32> to vector<2x8xf32>
    %71 = arith.subf %67, %70 : vector<2x8xf32>
    %72 = math.exp %71 : vector<2x8xf32>
    %cst_26 = arith.constant dense<0.000000e+00> : vector<2xf32>
    %73 = vector.multi_reduction <add>, %72, %cst_26 [1] : vector<2x8xf32> to vector<2xf32>
    %74 = vector.shape_cast %73 : vector<2xf32> to vector<2x1xf32>
    %75 = vector.broadcast %74 : vector<2x1xf32> to vector<2x8xf32>
    %76 = arith.divf %72, %75 : vector<2x8xf32>
    %77 = tpu.concatenate %76, %76, %76, %76, %76, %76, %76, %76, %76, %76, %76, %76, %76, %76, %76, %76 in 1 : vector<2x8xf32>, vector<2x8xf32>, vector<2x8xf32>, vector<2x8xf32>, vector<2x8xf32>, vector<2x8xf32>, vector<2x8xf32>, vector<2x8xf32>, vector<2x8xf32>, vector<2x8xf32>, vector<2x8xf32>, vector<2x8xf32>, vector<2x8xf32>, vector<2x8xf32>, vector<2x8xf32>, vector<2x8xf32> -> vector<2x128xf32>
    %78 = arith.mulf %0, %77 : vector<2x128xf32>
    %c0_27 = arith.constant 0 : index
    %c0_28 = arith.constant 0 : index
    %79 = vector.load %arg3[%c0_27, %c0_28] : memref<2x128xf32, #tpu.memory_space<vmem>>, vector<2x128xf32>
    tpu.vector_store %arg3[%c0_27, %c0_28], %78 {strides = array<i32>} : memref<2x128xf32, #tpu.memory_space<vmem>>, vector<2x128xf32>,
    return
  }
  func.func @transform_0(%arg0: i32) -> (i32, i32) {
    %c0_i32 = arith.constant 0 : i32
    %c0_i32_0 = arith.constant 0 : i32
    return %arg0, %c0_i32 : i32, i32
  }
  func.func @transform_1(%arg0: i32) -> (i32, i32) {
    %c0_i32 = arith.constant 0 : i32
    %c0_i32_0 = arith.constant 0 : i32
    %c0_i32_1 = arith.constant 0 : i32
    return %c0_i32, %c0_i32_0 : i32, i32
  }
  func.func @transform_2(%arg0: i32) -> (i32, i32) {
    %c0_i32 = arith.constant 0 : i32
    %c0_i32_0 = arith.constant 0 : i32
    return %arg0, %c0_i32 : i32, i32
  }
}

</mosaic_0001>

<llo_original>
// kernel: tpu_custom_call.1
$region0: #{tpu_custom_call.1}
  #allocation0 [shape = 'u32[]', space=smem, size = 0x4, offset = 0x4, fixed_abs, tag = 'smem constant byte address 0x4 - core index']
  #allocation1 [shape = 'u32[144,128]{1,0:T(1,128)}', space=vmem, size = 0x12000, scoped, tag = 'internal scratch']
  %s0 = inlined_call_operand.hbm [shape: f32[2,128], index: 0, kind: input, shape index: {}]
  %s1 = inlined_call_operand.hbm [shape: f32[56,256], index: 1, kind: input, shape index: {}]
  %s2 = inlined_call_operand.hbm [shape: f32[2,128], index: 2, kind: output, shape index: {}]
  %s3 = sld [smem:[#allocation0]]
  $region26: #{tpu_custom_call.1} parent=0
    _
  %s5 = ssub.s32 1, %s3
  %s6 = scalar_select 0, %s5, %s3
  $region1: #{tpu_custom_call.1} parent=0
    #allocation2 [shape = 'u8[1024]{0}', space=vmem, size = 0x400, scoped, tag = 'input window, operand 0, single buffered']
    #allocation3 [shape = 's32[1]{0}', space=sflag, size = 0x4, scoped, tag = 'scoped memory for tpu_custom_call.1']
    #allocation4 [shape = 's32[1]{0}', space=sflag, size = 0x4, scoped, tag = 'scoped memory for tpu_custom_call.1']
    #allocation5 [shape = 'u8[57344]{0}', space=vmem, size = 0xe000, scoped, tag = 'input window, operand 1, single buffered']
    #allocation6 [shape = 's32[1]{0}', space=sflag, size = 0x4, scoped, tag = 'scoped memory for tpu_custom_call.1']
    #allocation7 [shape = 'u8[1024]{0}', space=vmem, size = 0x400, scoped, tag = 'output window, operand 0, single buffered']
    %7 = vsyncpa [#allocation3], 0
    %8 = vsyncpa [#allocation6], 0
    %9 = vsyncpa [#allocation4], 0
    // Predicated region
    $region2: #{tpu_custom_call.1} parent=1 // pred_check
      _
    $region3: #{tpu_custom_call.1} parent=1 // pred_check_branch
      %11 = sbr.rel (0) target = $region5
    $region4: #{tpu_custom_call.1} parent=1 // pred_region
      %s13 = ssub.s32 32, 32
      %14 = vsyncadd [#allocation3], %s13
      %s16 = sshll.u32 [#allocation2], 4
      %s17 = int_to_ptr.vmem [resolvable:$true] %s16
      %19 = dma.hbm_to_vmem [thread:$0]  %s0, 32, %s17, [#allocation3]
    $region5: #{tpu_custom_call.1} parent=1 // pred_fallthru
      _
    // Predicated region
    $region6: #{tpu_custom_call.1} parent=1 // pred_check
      _
    $region7: #{tpu_custom_call.1} parent=1 // pred_check_branch
      %21 = sbr.rel (0) target = $region9
    $region8: #{tpu_custom_call.1} parent=1 // pred_region
      %s23 = ssub.s32 1792, 1792
      %24 = vsyncadd [#allocation6], %s23
      %s25 = sshll.u32 [#allocation5], 4
      %s26 = int_to_ptr.vmem [resolvable:$true] %s25
      %31 = dma.hbm_to_vmem [thread:$0]  %s1, 1792, %s26, [#allocation6], 256, 256, 16
    $region9: #{tpu_custom_call.1} parent=1 // pred_fallthru
      _
    // Predicated region
    $region10: #{tpu_custom_call.1} parent=1 // pred_check
      _
    $region11: #{tpu_custom_call.1} parent=1 // pred_check_branch
      %33 = sbr.rel (0) target = $region13
    $region12: #{tpu_custom_call.1} parent=1 // pred_region
      %34 = dma.done [#allocation3], 32
    $region13: #{tpu_custom_call.1} parent=1 // pred_fallthru
      _
    // Predicated region
    $region14: #{tpu_custom_call.1} parent=1 // pred_check
      _
    $region15: #{tpu_custom_call.1} parent=1 // pred_check_branch
      %36 = sbr.rel (0) target = $region17
    $region16: #{tpu_custom_call.1} parent=1 // pred_region
      %37 = dma.done [#allocation6], 1792
    $region17: #{tpu_custom_call.1} parent=1 // pred_fallthru
      _
    %v38 = vld [vmem:[#allocation2] sm:$0x3]
    %40 = vrot.lane.b32.xlu0 %v38, 64
    %v41 = vpop.permute.xlu0 %40
    %v43 = vadd.f32 %v38, %v41
    %v44 = vmax.f32 %v38, %v41
    %46 = vrot.lane.b32.xlu0 %v43, 96
    %v47 = vpop.permute.xlu0 %46
    %v49 = vadd.f32 %v43, %v47
    %51 = vrot.lane.b32.xlu0 %v44, 96
    %v52 = vpop.permute.xlu0 %51
    %v54 = vmax.f32 %v44, %v52
    %56 = vrot.lane.b32.xlu0 %v49, 112
    %v57 = vpop.permute.xlu0 %56
    %v59 = vadd.f32 %v49, %v57
    %61 = vrot.lane.b32.xlu0 %v54, 112
    %v62 = vpop.permute.xlu0 %61
    %v64 = vmax.f32 %v54, %v62
    %66 = vrot.lane.b32.xlu0 %v59, 120
    %v67 = vpop.permute.xlu0 %66
    %v69 = vadd.f32 %v59, %v67
    %71 = vrot.lane.b32.xlu0 %v64, 120
    %v72 = vpop.permute.xlu0 %71
    %v74 = vmax.f32 %v64, %v72
    %v75 = vmul.f32 %v69, 0.0625
    %v76 = vadd.f32 %v75, %v74
    %v77 = vmul.f32 %v76, 0.5
    %v78 = vld [vmem:[#allocation5] sm:$0xff]
    %v79 = vld [vmem:[#allocation5 + $0x8] sm:$0xff]
    %v80 = vld [vmem:[#allocation5 + $0x10] ss:$0 sm:$0xff]
    %v81 = vld [vmem:[#allocation5 + $0x18] ss:$0 sm:$0xff]
    %v82 = vld [vmem:[#allocation5 + $0x20] sm:$0xff]
    %v83 = vld [vmem:[#allocation5 + $0x30] sm:$0xff]
    %v84 = vld [vmem:[#allocation5 + $0x40] sm:$0xff]
    %v85 = vld [vmem:[#allocation5 + $0x50] sm:$0xff]
    %v86 = vld [vmem:[#allocation5 + $0x28] sm:$0xff]
    %v87 = vld [vmem:[#allocation5 + $0x38] sm:$0xff]
    %v88 = vld [vmem:[#allocation5 + $0x48] sm:$0xff]
    %v89 = vld [vmem:[#allocation5 + $0x58] sm:$0xff]
    %v90 = vld [vmem:[#allocation5 + $0x60] ss:$0 sm:$0xff]
    %v91 = vld [vmem:[#allocation5 + $0x68] ss:$0 sm:$0xff]
    %vm92 = vcmask 64512
    %v94 = vsel %vm92, %v77, 0
    %96 = vmatprep.subr.mxu0 0.0
    %v97 = vand.u32 %v78, 4294901760
    %98 = vmatpush1.msra.mxu0 %v97
    %99 = vmatprep.subr.mxu0 0.0
    %100 = vmatpush1.msra.mxu0 0.0
    %101 = vmatprep.subr.mxu0 0.0
    %102 = vmatpush1.msra.mxu0 0.0
    %103 = vmatprep.subr.mxu0 0.0
    %104 = vmatpush1.msra.mxu0 0.0
    %105 = vmatprep.subr.mxu0 0.0
    %106 = vmatpush1.msra.mxu0 0.0
    %107 = vmatprep.subr.mxu0 0.0
    %108 = vmatpush1.msra.mxu0 0.0
    %109 = vmatprep.subr.mxu0 0.0
    %110 = vmatpush1.msra.mxu0 0.0
    %111 = vmatprep.subr.mxu0 0.0
    %112 = vmatpush1.msra.mxu0 0.0
    %113 = vmatprep.subr.mxu0 0.0
    %114 = vmatpush1.msra.mxu0 0.0
    %115 = vmatprep.subr.mxu0 0.0
    %116 = vmatpush1.msra.mxu0 0.0
    %117 = vmatprep.subr.mxu0 0.0
    %118 = vmatpush1.msra.mxu0 0.0
    %119 = vmatprep.subr.mxu0 0.0
    %120 = vmatpush1.msra.mxu0 0.0
    %121 = vmatprep.subr.mxu0 0.0
    %122 = vmatpush1.msra.mxu0 0.0
    %123 = vmatprep.subr.mxu0 0.0
    %124 = vmatpush1.msra.mxu0 0.0
    %125 = vmatprep.subr.mxu0 0.0
    %126 = vmatpush1.msra.mxu0 0.0
    %127 = vmatprep.subr.mxu0 0.0
    %128 = vmatpush1.msra.mxu0 0.0
    %129 = vmatprep.subr.mxu0 0.0
    %130 = vmatpush1.msra.mxu0 0.0
    %131 = vmatprep.subr.mxu0 0.0
    %132 = vmatpush1.msra.mxu0 0.0
    %133 = vmatprep.subr.mxu0 0.0
    %134 = vmatpush1.msra.mxu0 0.0
    %135 = vmatprep.subr.mxu0 0.0
    %136 = vmatpush1.msra.mxu0 0.0
    %137 = vmatprep.subr.mxu0 0.0
    %138 = vmatpush1.msra.mxu0 0.0
    %139 = vmatprep.subr.mxu0 0.0
    %140 = vmatpush1.msra.mxu0 0.0
    %141 = vmatprep.subr.mxu0 0.0
    %142 = vmatpush1.msra.mxu0 0.0
    %143 = vmatprep.subr.mxu0 0.0
    %144 = vmatpush1.msra.mxu0 0.0
    %145 = vmatprep.subr.mxu0 0.0
    %146 = vmatpush1.msra.mxu0 0.0
    %147 = vmatprep.subr.mxu0 0.0
    %148 = vmatpush1.msra.mxu0 0.0
    %149 = vmatprep.subr.mxu0 0.0
    %150 = vmatpush1.msra.mxu0 0.0
    %151 = vmatprep.subr.mxu0 0.0
    %152 = vmatpush1.msra.mxu0 0.0
    %153 = vmatprep.subr.mxu0 0.0
    %154 = vmatpush1.msra.mxu0 0.0
    %155 = vmatprep.subr.mxu0 0.0
    %156 = vmatpush1.msra.mxu0 0.0
    %157 = vmatprep.subr.mxu0 0.0
    %158 = vmatpush1.msra.mxu0 0.0
    %159 = vmatprep.subr.mxu0 0.0
    %160 = vmatpush1.msra.mxu0 0.0
    %161 = vmatprep.mubr.f32.mxu0 0.0
    %v162 = vand.u32 %v94, 4294901760
    %v163 = vsub.f32 %v94, %v162
    %v164 = vand.u32 %v163, 4294901760
    %v165 = vsub.f32 %v163, %v164
    %v166 = vand.u32 %v165, 4294901760
    %167 = vmatmul.mubr.f32.gmra.mrb[0].mxu0 %v166
    %v168 = vpop.f32.mrb[0].mxu0
    %v169 = vadd.f32 %v80, %v168
    %v170 = vpop.f32.mrb[0].mxu0
    %171 = vdwg.mxu0
    %172 = vmatprep.subr.mxu0 0.0
    %v173 = vand.u32 %v78, 4294901760
    %v174 = vsub.f32 %v78, %v173
    %v175 = vand.u32 %v174, 4294901760
    %v176 = vsub.f32 %v174, %v175
    %v177 = vand.u32 %v176, 4294901760
    %178 = vmatpush1.msra.mxu0 %v177
    %179 = vmatprep.subr.mxu0 0.0
    %180 = vmatpush1.msra.mxu0 0.0
    %181 = vmatprep.subr.mxu0 0.0
    %182 = vmatpush1.msra.mxu0 0.0
    %183 = vmatprep.subr.mxu0 0.0
    %184 = vmatpush1.msra.mxu0 0.0
    %185 = vmatprep.subr.mxu0 0.0
    %186 = vmatpush1.msra.mxu0 0.0
    %187 = vmatprep.subr.mxu0 0.0
    %188 = vmatpush1.msra.mxu0 0.0
    %189 = vmatprep.subr.mxu0 0.0
    %190 = vmatpush1.msra.mxu0 0.0
    %191 = vmatprep.subr.mxu0 0.0
    %192 = vmatpush1.msra.mxu0 0.0
    %193 = vmatprep.subr.mxu0 0.0
    %194 = vmatpush1.msra.mxu0 0.0
    %195 = vmatprep.subr.mxu0 0.0
    %196 = vmatpush1.msra.mxu0 0.0
    %197 = vmatprep.subr.mxu0 0.0
    %198 = vmatpush1.msra.mxu0 0.0
    %199 = vmatprep.subr.mxu0 0.0
    %200 = vmatpush1.msra.mxu0 0.0
    %201 = vmatprep.subr.mxu0 0.0
    %202 = vmatpush1.msra.mxu0 0.0
    %203 = vmatprep.subr.mxu0 0.0
    %204 = vmatpush1.msra.mxu0 0.0
    %205 = vmatprep.subr.mxu0 0.0
    %206 = vmatpush1.msra.mxu0 0.0
    %207 = vmatprep.subr.mxu0 0.0
    %208 = vmatpush1.msra.mxu0 0.0
    %209 = vmatprep.subr.mxu0 0.0
    %210 = vmatpush1.msra.mxu0 0.0
    %211 = vmatprep.subr.mxu0 0.0
    %212 = vmatpush1.msra.mxu0 0.0
    %213 = vmatprep.subr.mxu0 0.0
    %214 = vmatpush1.msra.mxu0 0.0
    %215 = vmatprep.subr.mxu0 0.0
    %216 = vmatpush1.msra.mxu0 0.0
    %217 = vmatprep.subr.mxu0 0.0
    %218 = vmatpush1.msra.mxu0 0.0
    %219 = vmatprep.subr.mxu0 0.0
    %220 = vmatpush1.msra.mxu0 0.0
    %221 = vmatprep.subr.mxu0 0.0
    %222 = vmatpush1.msra.mxu0 0.0
    %223 = vmatprep.subr.mxu0 0.0
    %224 = vmatpush1.msra.mxu0 0.0
    %225 = vmatprep.subr.mxu0 0.0
    %226 = vmatpush1.msra.mxu0 0.0
    %227 = vmatprep.subr.mxu0 0.0
    %228 = vmatpush1.msra.mxu0 0.0
    %229 = vmatprep.subr.mxu0 0.0
    %230 = vmatpush1.msra.mxu0 0.0
    %231 = vmatprep.subr.mxu0 0.0
    %232 = vmatpush1.msra.mxu0 0.0
    %233 = vmatprep.subr.mxu0 0.0
    %234 = vmatpush1.msra.mxu0 0.0
    %235 = vmatprep.subr.mxu0 0.0
    %236 = vmatpush1.msra.mxu0 0.0
    %237 = vmatprep.subr.mxu0 0.0
    %238 = vmatpush1.msra.mxu0 0.0
    %239 = vmatprep.subr.mxu0 0.0
    %240 = vmatpush1.msra.mxu0 0.0
    %241 = vmatprep.mubr.f32.mxu0 0.0
    %v242 = vand.u32 %v94, 4294901760
    %243 = vmatmul.mubr.f32.gmra.mrb[0].mxu0 %v242
    %v244 = vpop.f32.mrb[0].mxu0
    %v245 = vadd.f32 %v169, %v244
    %v246 = vpop.f32.mrb[0].mxu0
    %247 = vdwg.mxu0
    %248 = vmatprep.subr.mxu0 0.0
    %v249 = vand.u32 %v78, 4294901760
    %v250 = vsub.f32 %v78, %v249
    %251 = vmatpush1.msra.mxu0 %v250
    %252 = vmatprep.subr.mxu0 0.0
    %253 = vmatpush1.msra.mxu0 0.0
    %254 = vmatprep.subr.mxu0 0.0
    %255 = vmatpush1.msra.mxu0 0.0
    %256 = vmatprep.subr.mxu0 0.0
    %257 = vmatpush1.msra.mxu0 0.0
    %258 = vmatprep.subr.mxu0 0.0
    %259 = vmatpush1.msra.mxu0 0.0
    %260 = vmatprep.subr.mxu0 0.0
    %261 = vmatpush1.msra.mxu0 0.0
    %262 = vmatprep.subr.mxu0 0.0
    %263 = vmatpush1.msra.mxu0 0.0
    %264 = vmatprep.subr.mxu0 0.0
    %265 = vmatpush1.msra.mxu0 0.0
    %266 = vmatprep.subr.mxu0 0.0
    %267 = vmatpush1.msra.mxu0 0.0
    %268 = vmatprep.subr.mxu0 0.0
    %269 = vmatpush1.msra.mxu0 0.0
    %270 = vmatprep.subr.mxu0 0.0
    %271 = vmatpush1.msra.mxu0 0.0
    %272 = vmatprep.subr.mxu0 0.0
    %273 = vmatpush1.msra.mxu0 0.0
    %274 = vmatprep.subr.mxu0 0.0
    %275 = vmatpush1.msra.mxu0 0.0
    %276 = vmatprep.subr.mxu0 0.0
    %277 = vmatpush1.msra.mxu0 0.0
    %278 = vmatprep.subr.mxu0 0.0
    %279 = vmatpush1.msra.mxu0 0.0
    %280 = vmatprep.subr.mxu0 0.0
    %281 = vmatpush1.msra.mxu0 0.0
    %282 = vmatprep.subr.mxu0 0.0
    %283 = vmatpush1.msra.mxu0 0.0
    %284 = vmatprep.subr.mxu0 0.0
    %285 = vmatpush1.msra.mxu0 0.0
    %286 = vmatprep.subr.mxu0 0.0
    %287 = vmatpush1.msra.mxu0 0.0
    %288 = vmatprep.subr.mxu0 0.0
    %289 = vmatpush1.msra.mxu0 0.0
    %290 = vmatprep.subr.mxu0 0.0
    %291 = vmatpush1.msra.mxu0 0.0
    %292 = vmatprep.subr.mxu0 0.0
    %293 = vmatpush1.msra.mxu0 0.0
    %294 = vmatprep.subr.mxu0 0.0
    %295 = vmatpush1.msra.mxu0 0.0
    %296 = vmatprep.subr.mxu0 0.0
    %297 = vmatpush1.msra.mxu0 0.0
    %298 = vmatprep.subr.mxu0 0.0
    %299 = vmatpush1.msra.mxu0 0.0
    %300 = vmatprep.subr.mxu0 0.0
    %301 = vmatpush1.msra.mxu0 0.0
    %302 = vmatprep.subr.mxu0 0.0
    %303 = vmatpush1.msra.mxu0 0.0
    %304 = vmatprep.subr.mxu0 0.0
    %305 = vmatpush1.msra.mxu0 0.0
    %306 = vmatprep.subr.mxu0 0.0
    %307 = vmatpush1.msra.mxu0 0.0
    %308 = vmatprep.subr.mxu0 0.0
    %309 = vmatpush1.msra.mxu0 0.0
    %310 = vmatprep.subr.mxu0 0.0
    %311 = vmatpush1.msra.mxu0 0.0
    %312 = vmatprep.subr.mxu0 0.0
    %313 = vmatpush1.msra.mxu0 0.0
    %314 = vmatprep.mubr.f32.mxu0 0.0
    %v315 = vand.u32 %v94, 4294901760
    %v316 = vsub.f32 %v94, %v315
    %317 = vmatmul.mubr.f32.gmra.mrb[0].mxu0 %v316
    %v318 = vpop.f32.mrb[0].mxu0
    %v319 = vadd.f32 %v245, %v318
    %v320 = vpop.f32.mrb[0].mxu0
    %321 = vdwg.mxu0
    %322 = vmatprep.subr.mxu0 0.0
    %v323 = vand.u32 %v78, 4294901760
    %324 = vmatpush1.msra.mxu0 %v323
    %325 = vmatprep.subr.mxu0 0.0
    %326 = vmatpush1.msra.mxu0 0.0
    %327 = vmatprep.subr.mxu0 0.0
    %328 = vmatpush1.msra.mxu0 0.0
    %329 = vmatprep.subr.mxu0 0.0
    %330 = vmatpush1.msra.mxu0 0.0
    %331 = vmatprep.subr.mxu0 0.0
    %332 = vmatpush1.msra.mxu0 0.0
    %333 = vmatprep.subr.mxu0 0.0
    %334 = vmatpush1.msra.mxu0 0.0
    %335 = vmatprep.subr.mxu0 0.0
    %336 = vmatpush1.msra.mxu0 0.0
    %337 = vmatprep.subr.mxu0 0.0
    %338 = vmatpush1.msra.mxu0 0.0
    %339 = vmatprep.subr.mxu0 0.0
    %340 = vmatpush1.msra.mxu0 0.0
    %341 = vmatprep.subr.mxu0 0.0
    %342 = vmatpush1.msra.mxu0 0.0
    %343 = vmatprep.subr.mxu0 0.0
    %344 = vmatpush1.msra.mxu0 0.0
    %345 = vmatprep.subr.mxu0 0.0
    %346 = vmatpush1.msra.mxu0 0.0
    %347 = vmatprep.subr.mxu0 0.0
    %348 = vmatpush1.msra.mxu0 0.0
    %349 = vmatprep.subr.mxu0 0.0
    %350 = vmatpush1.msra.mxu0 0.0
    %351 = vmatprep.subr.mxu0 0.0
    %352 = vmatpush1.msra.mxu0 0.0
    %353 = vmatprep.subr.mxu0 0.0
    %354 = vmatpush1.msra.mxu0 0.0
    %355 = vmatprep.subr.mxu0 0.0
    %356 = vmatpush1.msra.mxu0 0.0
    %357 = vmatprep.subr.mxu0 0.0
    %358 = vmatpush1.msra.mxu0 0.0
    %359 = vmatprep.subr.mxu0 0.0
    %360 = vmatpush1.msra.mxu0 0.0
    %361 = vmatprep.subr.mxu0 0.0
    %362 = vmatpush1.msra.mxu0 0.0
    %363 = vmatprep.subr.mxu0 0.0
    %364 = vmatpush1.msra.mxu0 0.0
    %365 = vmatprep.subr.mxu0 0.0
    %366 = vmatpush1.msra.mxu0 0.0
    %367 = vmatprep.subr.mxu0 0.0
    %368 = vmatpush1.msra.mxu0 0.0
    %369 = vmatprep.subr.mxu0 0.0
    %370 = vmatpush1.msra.mxu0 0.0
    %371 = vmatprep.subr.mxu0 0.0
    %372 = vmatpush1.msra.mxu0 0.0
    %373 = vmatprep.subr.mxu0 0.0
    %374 = vmatpush1.msra.mxu0 0.0
    %375 = vmatprep.subr.mxu0 0.0
    %376 = vmatpush1.msra.mxu0 0.0
    %377 = vmatprep.subr.mxu0 0.0
    %378 = vmatpush1.msra.mxu0 0.0
    %379 = vmatprep.subr.mxu0 0.0
    %380 = vmatpush1.msra.mxu0 0.0
    %381 = vmatprep.subr.mxu0 0.0
    %382 = vmatpush1.msra.mxu0 0.0
    %383 = vmatprep.subr.mxu0 0.0
    %384 = vmatpush1.msra.mxu0 0.0
    %385 = vmatprep.subr.mxu0 0.0
    %386 = vmatpush1.msra.mxu0 0.0
    %387 = vmatprep.mubr.f32.mxu0 0.0
    %v388 = vand.u32 %v94, 4294901760
    %v389 = vsub.f32 %v94, %v388
    %v390 = vand.u32 %v389, 4294901760
    %391 = vmatmul.mubr.f32.gmra.mrb[0].mxu0 %v390
    %v392 = vpop.f32.mrb[0].mxu0
    %v393 = vadd.f32 %v319, %v392
    %v394 = vpop.f32.mrb[0].mxu0
    %395 = vdwg.mxu0
    %396 = vmatprep.subr.mxu0 0.0
    %v397 = vand.u32 %v78, 4294901760
    %v398 = vsub.f32 %v78, %v397
    %v399 = vand.u32 %v398, 4294901760
    %400 = vmatpush1.msra.mxu0 %v399
    %401 = vmatprep.subr.mxu0 0.0
    %402 = vmatpush1.msra.mxu0 0.0
    %403 = vmatprep.subr.mxu0 0.0
    %404 = vmatpush1.msra.mxu0 0.0
    %405 = vmatprep.subr.mxu0 0.0
    %406 = vmatpush1.msra.mxu0 0.0
    %407 = vmatprep.subr.mxu0 0.0
    %408 = vmatpush1.msra.mxu0 0.0
    %409 = vmatprep.subr.mxu0 0.0
    %410 = vmatpush1.msra.mxu0 0.0
    %411 = vmatprep.subr.mxu0 0.0
    %412 = vmatpush1.msra.mxu0 0.0
    %413 = vmatprep.subr.mxu0 0.0
    %414 = vmatpush1.msra.mxu0 0.0
    %415 = vmatprep.subr.mxu0 0.0
    %416 = vmatpush1.msra.mxu0 0.0
    %417 = vmatprep.subr.mxu0 0.0
    %418 = vmatpush1.msra.mxu0 0.0
    %419 = vmatprep.subr.mxu0 0.0
    %420 = vmatpush1.msra.mxu0 0.0
    %421 = vmatprep.subr.mxu0 0.0
    %422 = vmatpush1.msra.mxu0 0.0
    %423 = vmatprep.subr.mxu0 0.0
    %424 = vmatpush1.msra.mxu0 0.0
    %425 = vmatprep.subr.mxu0 0.0
    %426 = vmatpush1.msra.mxu0 0.0
    %427 = vmatprep.subr.mxu0 0.0
    %428 = vmatpush1.msra.mxu0 0.0
    %429 = vmatprep.subr.mxu0 0.0
    %430 = vmatpush1.msra.mxu0 0.0
    %431 = vmatprep.subr.mxu0 0.0
    %432 = vmatpush1.msra.mxu0 0.0
    %433 = vmatprep.subr.mxu0 0.0
    %434 = vmatpush1.msra.mxu0 0.0
    %435 = vmatprep.subr.mxu0 0.0
    %436 = vmatpush1.msra.mxu0 0.0
    %437 = vmatprep.subr.mxu0 0.0
    %438 = vmatpush1.msra.mxu0 0.0
    %439 = vmatprep.subr.mxu0 0.0
    %440 = vmatpush1.msra.mxu0 0.0
    %441 = vmatprep.subr.mxu0 0.0
    %442 = vmatpush1.msra.mxu0 0.0
    %443 = vmatprep.subr.mxu0 0.0
    %444 = vmatpush1.msra.mxu0 0.0
    %445 = vmatprep.subr.mxu0 0.0
    %446 = vmatpush1.msra.mxu0 0.0
    %447 = vmatprep.subr.mxu0 0.0
    %448 = vmatpush1.msra.mxu0 0.0
    %449 = vmatprep.subr.mxu0 0.0
    %450 = vmatpush1.msra.mxu0 0.0
    %451 = vmatprep.subr.mxu0 0.0
    %452 = vmatpush1.msra.mxu0 0.0
    %453 = vmatprep.subr.mxu0 0.0
    %454 = vmatpush1.msra.mxu0 0.0
    %455 = vmatprep.subr.mxu0 0.0
    %456 = vmatpush1.msra.mxu0 0.0
    %457 = vmatprep.subr.mxu0 0.0
    %458 = vmatpush1.msra.mxu0 0.0
    %459 = vmatprep.subr.mxu0 0.0
    %460 = vmatpush1.msra.mxu0 0.0
    %461 = vmatprep.subr.mxu0 0.0
    %462 = vmatpush1.msra.mxu0 0.0
    %463 = vmatprep.mubr.f32.mxu0 0.0
    %v464 = vand.u32 %v94, 4294901760
    %465 = vmatmul.mubr.f32.gmra.mrb[0].mxu0 %v464
    %v466 = vpop.f32.mrb[0].mxu0
    %v467 = vadd.f32 %v393, %v466
    %v468 = vpop.f32.mrb[0].mxu0
    %469 = vdwg.mxu0
    %470 = vmatprep.subr.mxu0 0.0
    %v471 = vand.u32 %v78, 4294901760
    %472 = vmatpush1.msra.mxu0 %v471
    %473 = vmatprep.subr.mxu0 0.0
    %474 = vmatpush1.msra.mxu0 0.0
    %475 = vmatprep.subr.mxu0 0.0
    %476 = vmatpush1.msra.mxu0 0.0
    %477 = vmatprep.subr.mxu0 0.0
    %478 = vmatpush1.msra.mxu0 0.0
    %479 = vmatprep.subr.mxu0 0.0
    %480 = vmatpush1.msra.mxu0 0.0
    %481 = vmatprep.subr.mxu0 0.0
    %482 = vmatpush1.msra.mxu0 0.0
    %483 = vmatprep.subr.mxu0 0.0
    %484 = vmatpush1.msra.mxu0 0.0
    %485 = vmatprep.subr.mxu0 0.0
    %486 = vmatpush1.msra.mxu0 0.0
    %487 = vmatprep.subr.mxu0 0.0
    %488 = vmatpush1.msra.mxu0 0.0
    %489 = vmatprep.subr.mxu0 0.0
    %490 = vmatpush1.msra.mxu0 0.0
    %491 = vmatprep.subr.mxu0 0.0
    %492 = vmatpush1.msra.mxu0 0.0
    %493 = vmatprep.subr.mxu0 0.0
    %494 = vmatpush1.msra.mxu0 0.0
    %495 = vmatprep.subr.mxu0 0.0
    %496 = vmatpush1.msra.mxu0 0.0
    %497 = vmatprep.subr.mxu0 0.0
    %498 = vmatpush1.msra.mxu0 0.0
    %499 = vmatprep.subr.mxu0 0.0
    %500 = vmatpush1.msra.mxu0 0.0
    %501 = vmatprep.subr.mxu0 0.0
    %502 = vmatpush1.msra.mxu0 0.0
    %503 = vmatprep.subr.mxu0 0.0
    %504 = vmatpush1.msra.mxu0 0.0
    %505 = vmatprep.subr.mxu0 0.0
    %506 = vmatpush1.msra.mxu0 0.0
    %507 = vmatprep.subr.mxu0 0.0
    %508 = vmatpush1.msra.mxu0 0.0
    %509 = vmatprep.subr.mxu0 0.0
    %510 = vmatpush1.msra.mxu0 0.0
    %511 = vmatprep.subr.mxu0 0.0
    %512 = vmatpush1.msra.mxu0 0.0
    %513 = vmatprep.subr.mxu0 0.0
    %514 = vmatpush1.msra.mxu0 0.0
    %515 = vmatprep.subr.mxu0 0.0
    %516 = vmatpush1.msra.mxu0 0.0
    %517 = vmatprep.subr.mxu0 0.0
    %518 = vmatpush1.msra.mxu0 0.0
    %519 = vmatprep.subr.mxu0 0.0
    %520 = vmatpush1.msra.mxu0 0.0
    %521 = vmatprep.subr.mxu0 0.0
    %522 = vmatpush1.msra.mxu0 0.0
    %523 = vmatprep.subr.mxu0 0.0
    %524 = vmatpush1.msra.mxu0 0.0
    %525 = vmatprep.subr.mxu0 0.0
    %526 = vmatpush1.msra.mxu0 0.0
    %527 = vmatprep.subr.mxu0 0.0
    %528 = vmatpush1.msra.mxu0 0.0
    %529 = vmatprep.subr.mxu0 0.0
    %530 = vmatpush1.msra.mxu0 0.0
    %531 = vmatprep.subr.mxu0 0.0
    %532 = vmatpush1.msra.mxu0 0.0
    %533 = vmatprep.subr.mxu0 0.0
    %534 = vmatpush1.msra.mxu0 0.0
    %535 = vmatprep.mubr.f32.mxu0 0.0
    %v536 = vand.u32 %v94, 4294901760
    %537 = vmatmul.mubr.f32.gmra.mrb[0].mxu0 %v536
    %v538 = vpop.f32.mrb[0].mxu0
    %v539 = vadd.f32 %v467, %v538
    %v540 = vpop.f32.mrb[0].mxu0
    %541 = vdwg.mxu0
    %vm542 = vcmp.gt.f32.partialorder %v539, 0.0
    %v543 = vmul.f32 %v539, 0.2
    %v544 = vsel %vm542, %v539, %v543
    %vm545 = vcmask 261120
    %v547 = vsel %vm545, %v544, 0
    %549 = vmatprep.subr.mxu0 0.0
    %v550 = vand.u32 %v82, 4294901760
    %551 = vmatpush1.msra.mxu0 %v550
    %552 = vmatprep.subr.mxu0 0.0
    %v553 = vand.u32 %v83, 4294901760
    %554 = vmatpush1.msra.mxu0 %v553
    %555 = vmatprep.subr.mxu0 0.0
    %v556 = vand.u32 %v84, 4294901760
    %557 = vmatpush1.msra.mxu0 %v556
    %558 = vmatprep.subr.mxu0 0.0
    %v559 = vand.u32 %v85, 4294901760
    %560 = vmatpush1.msra.mxu0 %v559
    %561 = vmatprep.subr.mxu0 0.0
    %562 = vmatpush1.msra.mxu0 0.0
    %563 = vmatprep.subr.mxu0 0.0
    %564 = vmatpush1.msra.mxu0 0.0
    %565 = vmatprep.subr.mxu0 0.0
    %566 = vmatpush1.msra.mxu0 0.0
    %567 = vmatprep.subr.mxu0 0.0
    %568 = vmatpush1.msra.mxu0 0.0
    %569 = vmatprep.subr.mxu0 0.0
    %570 = vmatpush1.msra.mxu0 0.0
    %571 = vmatprep.subr.mxu0 0.0
    %572 = vmatpush1.msra.mxu0 0.0
    %573 = vmatprep.subr.mxu0 0.0
    %574 = vmatpush1.msra.mxu0 0.0
    %575 = vmatprep.subr.mxu0 0.0
    %576 = vmatpush1.msra.mxu0 0.0
    %577 = vmatprep.subr.mxu0 0.0
    %578 = vmatpush1.msra.mxu0 0.0
    %579 = vmatprep.subr.mxu0 0.0
    %580 = vmatpush1.msra.mxu0 0.0
    %581 = vmatprep.subr.mxu0 0.0
    %582 = vmatpush1.msra.mxu0 0.0
    %583 = vmatprep.subr.mxu0 0.0
    %584 = vmatpush1.msra.mxu0 0.0
    %585 = vmatprep.subr.mxu0 0.0
    %586 = vmatpush1.msra.mxu0 0.0
    %587 = vmatprep.subr.mxu0 0.0
    %588 = vmatpush1.msra.mxu0 0.0
    %589 = vmatprep.subr.mxu0 0.0
    %590 = vmatpush1.msra.mxu0 0.0
    %591 = vmatprep.subr.mxu0 0.0
    %592 = vmatpush1.msra.mxu0 0.0
    %593 = vmatprep.subr.mxu0 0.0
    %594 = vmatpush1.msra.mxu0 0.0
    %595 = vmatprep.subr.mxu0 0.0
    %596 = vmatpush1.msra.mxu0 0.0
    %597 = vmatprep.subr.mxu0 0.0
    %598 = vmatpush1.msra.mxu0 0.0
    %599 = vmatprep.subr.mxu0 0.0
    %600 = vmatpush1.msra.mxu0 0.0
    %601 = vmatprep.subr.mxu0 0.0
    %602 = vmatpush1.msra.mxu0 0.0
    %603 = vmatprep.subr.mxu0 0.0
    %604 = vmatpush1.msra.mxu0 0.0
    %605 = vmatprep.subr.mxu0 0.0
    %606 = vmatpush1.msra.mxu0 0.0
    %607 = vmatprep.subr.mxu0 0.0
    %608 = vmatpush1.msra.mxu0 0.0
    %609 = vmatprep.subr.mxu0 0.0
    %610 = vmatpush1.msra.mxu0 0.0
    %611 = vmatprep.subr.mxu0 0.0
    %612 = vmatpush1.msra.mxu0 0.0
    %613 = vmatprep.subr.mxu0 0.0
    %614 = vmatpush1.msra.mxu0 0.0
    %615 = vmatprep.subr.mxu0 0.0
    %616 = vmatpush1.msra.mxu0 0.0
    %617 = vmatprep.mubr.f32.mxu0 0.0
    %v618 = vand.u32 %v547, 4294901760
    %v619 = vsub.f32 %v547, %v618
    %v620 = vand.u32 %v619, 4294901760
    %v621 = vsub.f32 %v619, %v620
    %v622 = vand.u32 %v621, 4294901760
    %623 = vmatmul.mubr.f32.gmra.mrb[0].mxu0 %v622
    %v624 = vpop.f32.mrb[0].mxu0
    %v625 = vadd.f32 %v90, %v624
    %v626 = vpop.f32.mrb[0].mxu0
    %627 = vdwg.mxu0
    %628 = vmatprep.subr.mxu0 0.0
    %v629 = vand.u32 %v82, 4294901760
    %v630 = vsub.f32 %v82, %v629
    %v631 = vand.u32 %v630, 4294901760
    %v632 = vsub.f32 %v630, %v631
    %v633 = vand.u32 %v632, 4294901760
    %634 = vmatpush1.msra.mxu0 %v633
    %635 = vmatprep.subr.mxu0 0.0
    %v636 = vand.u32 %v83, 4294901760
    %v637 = vsub.f32 %v83, %v636
    %v638 = vand.u32 %v637, 4294901760
    %v639 = vsub.f32 %v637, %v638
    %v640 = vand.u32 %v639, 4294901760
    %641 = vmatpush1.msra.mxu0 %v640
    %642 = vmatprep.subr.mxu0 0.0
    %v643 = vand.u32 %v84, 4294901760
    %v644 = vsub.f32 %v84, %v643
    %v645 = vand.u32 %v644, 4294901760
    %v646 = vsub.f32 %v644, %v645
    %v647 = vand.u32 %v646, 4294901760
    %648 = vmatpush1.msra.mxu0 %v647
    %649 = vmatprep.subr.mxu0 0.0
    %v650 = vand.u32 %v85, 4294901760
    %v651 = vsub.f32 %v85, %v650
    %v652 = vand.u32 %v651, 4294901760
    %v653 = vsub.f32 %v651, %v652
    %v654 = vand.u32 %v653, 4294901760
    %655 = vmatpush1.msra.mxu0 %v654
    %656 = vmatprep.subr.mxu0 0.0
    %657 = vmatpush1.msra.mxu0 0.0
    %658 = vmatprep.subr.mxu0 0.0
    %659 = vmatpush1.msra.mxu0 0.0
    %660 = vmatprep.subr.mxu0 0.0
    %661 = vmatpush1.msra.mxu0 0.0
    %662 = vmatprep.subr.mxu0 0.0
    %663 = vmatpush1.msra.mxu0 0.0
    %664 = vmatprep.subr.mxu0 0.0
    %665 = vmatpush1.msra.mxu0 0.0
    %666 = vmatprep.subr.mxu0 0.0
    %667 = vmatpush1.msra.mxu0 0.0
    %668 = vmatprep.subr.mxu0 0.0
    %669 = vmatpush1.msra.mxu0 0.0
    %670 = vmatprep.subr.mxu0 0.0
    %671 = vmatpush1.msra.mxu0 0.0
    %672 = vmatprep.subr.mxu0 0.0
    %673 = vmatpush1.msra.mxu0 0.0
    %674 = vmatprep.subr.mxu0 0.0
    %675 = vmatpush1.msra.mxu0 0.0
    %676 = vmatprep.subr.mxu0 0.0
    %677 = vmatpush1.msra.mxu0 0.0
    %678 = vmatprep.subr.mxu0 0.0
    %679 = vmatpush1.msra.mxu0 0.0
    %680 = vmatprep.subr.mxu0 0.0
    %681 = vmatpush1.msra.mxu0 0.0
    %682 = vmatprep.subr.mxu0 0.0
    %683 = vmatpush1.msra.mxu0 0.0
    %684 = vmatprep.subr.mxu0 0.0
    %685 = vmatpush1.msra.mxu0 0.0
    %686 = vmatprep.subr.mxu0 0.0
    %687 = vmatpush1.msra.mxu0 0.0
    %688 = vmatprep.subr.mxu0 0.0
    %689 = vmatpush1.msra.mxu0 0.0
    %690 = vmatprep.subr.mxu0 0.0
    %691 = vmatpush1.msra.mxu0 0.0
    %692 = vmatprep.subr.mxu0 0.0
    %693 = vmatpush1.msra.mxu0 0.0
    %694 = vmatprep.subr.mxu0 0.0
    %695 = vmatpush1.msra.mxu0 0.0
    %696 = vmatprep.subr.mxu0 0.0
    %697 = vmatpush1.msra.mxu0 0.0
    %698 = vmatprep.subr.mxu0 0.0
    %699 = vmatpush1.msra.mxu0 0.0
    %700 = vmatprep.subr.mxu0 0.0
    %701 = vmatpush1.msra.mxu0 0.0
    %702 = vmatprep.subr.mxu0 0.0
    %703 = vmatpush1.msra.mxu0 0.0
    %704 = vmatprep.subr.mxu0 0.0
    %705 = vmatpush1.msra.mxu0 0.0
    %706 = vmatprep.subr.mxu0 0.0
    %707 = vmatpush1.msra.mxu0 0.0
    %708 = vmatprep.subr.mxu0 0.0
    %709 = vmatpush1.msra.mxu0 0.0
    %710 = vmatprep.subr.mxu0 0.0
    %711 = vmatpush1.msra.mxu0 0.0
    %712 = vmatprep.mubr.f32.mxu0 0.0
    %v713 = vand.u32 %v547, 4294901760
    %714 = vmatmul.mubr.f32.gmra.mrb[0].mxu0 %v713
    %v715 = vpop.f32.mrb[0].mxu0
    %v716 = vadd.f32 %v625, %v715
    %v717 = vpop.f32.mrb[0].mxu0
    %718 = vdwg.mxu0
    %719 = vmatprep.subr.mxu0 0.0
    %v720 = vand.u32 %v82, 4294901760
    %v721 = vsub.f32 %v82, %v720
    %722 = vmatpush1.msra.mxu0 %v721
    %723 = vmatprep.subr.mxu0 0.0
    %v724 = vand.u32 %v83, 4294901760
    %v725 = vsub.f32 %v83, %v724
    %726 = vmatpush1.msra.mxu0 %v725
    %727 = vmatprep.subr.mxu0 0.0
    %v728 = vand.u32 %v84, 4294901760
    %v729 = vsub.f32 %v84, %v728
    %730 = vmatpush1.msra.mxu0 %v729
    %731 = vmatprep.subr.mxu0 0.0
    %v732 = vand.u32 %v85, 4294901760
    %v733 = vsub.f32 %v85, %v732
    %734 = vmatpush1.msra.mxu0 %v733
    %735 = vmatprep.subr.mxu0 0.0
    %736 = vmatpush1.msra.mxu0 0.0
    %737 = vmatprep.subr.mxu0 0.0
    %738 = vmatpush1.msra.mxu0 0.0
    %739 = vmatprep.subr.mxu0 0.0
    %740 = vmatpush1.msra.mxu0 0.0
    %741 = vmatprep.subr.mxu0 0.0
    %742 = vmatpush1.msra.mxu0 0.0
    %743 = vmatprep.subr.mxu0 0.0
    %744 = vmatpush1.msra.mxu0 0.0
    %745 = vmatprep.subr.mxu0 0.0
    %746 = vmatpush1.msra.mxu0 0.0
    %747 = vmatprep.subr.mxu0 0.0
    %748 = vmatpush1.msra.mxu0 0.0
    %749 = vmatprep.subr.mxu0 0.0
    %750 = vmatpush1.msra.mxu0 0.0
    %751 = vmatprep.subr.mxu0 0.0
    %752 = vmatpush1.msra.mxu0 0.0
    %753 = vmatprep.subr.mxu0 0.0
    %754 = vmatpush1.msra.mxu0 0.0
    %755 = vmatprep.subr.mxu0 0.0
    %756 = vmatpush1.msra.mxu0 0.0
    %757 = vmatprep.subr.mxu0 0.0
    %758 = vmatpush1.msra.mxu0 0.0
    %759 = vmatprep.subr.mxu0 0.0
    %760 = vmatpush1.msra.mxu0 0.0
    %761 = vmatprep.subr.mxu0 0.0
    %762 = vmatpush1.msra.mxu0 0.0
    %763 = vmatprep.subr.mxu0 0.0
    %764 = vmatpush1.msra.mxu0 0.0
    %765 = vmatprep.subr.mxu0 0.0
    %766 = vmatpush1.msra.mxu0 0.0
    %767 = vmatprep.subr.mxu0 0.0
    %768 = vmatpush1.msra.mxu0 0.0
    %769 = vmatprep.subr.mxu0 0.0
    %770 = vmatpush1.msra.mxu0 0.0
    %771 = vmatprep.subr.mxu0 0.0
    %772 = vmatpush1.msra.mxu0 0.0
    %773 = vmatprep.subr.mxu0 0.0
    %774 = vmatpush1.msra.mxu0 0.0
    %775 = vmatprep.subr.mxu0 0.0
    %776 = vmatpush1.msra.mxu0 0.0
    %777 = vmatprep.subr.mxu0 0.0
    %778 = vmatpush1.msra.mxu0 0.0
    %779 = vmatprep.subr.mxu0 0.0
    %780 = vmatpush1.msra.mxu0 0.0
    %781 = vmatprep.subr.mxu0 0.0
    %782 = vmatpush1.msra.mxu0 0.0
    %783 = vmatprep.subr.mxu0 0.0
    %784 = vmatpush1.msra.mxu0 0.0
    %785 = vmatprep.subr.mxu0 0.0
    %786 = vmatpush1.msra.mxu0 0.0
    %787 = vmatprep.subr.mxu0 0.0
    %788 = vmatpush1.msra.mxu0 0.0
    %789 = vmatprep.subr.mxu0 0.0
    %790 = vmatpush1.msra.mxu0 0.0
    %791 = vmatprep.mubr.f32.mxu0 0.0
    %v792 = vand.u32 %v547, 4294901760
    %v793 = vsub.f32 %v547, %v792
    %794 = vmatmul.mubr.f32.gmra.mrb[0].mxu0 %v793
    %v795 = vpop.f32.mrb[0].mxu0
    %v796 = vadd.f32 %v716, %v795
    %v797 = vpop.f32.mrb[0].mxu0
    %798 = vdwg.mxu0
    %799 = vmatprep.subr.mxu0 0.0
    %v800 = vand.u32 %v82, 4294901760
    %801 = vmatpush1.msra.mxu0 %v800
    %802 = vmatprep.subr.mxu0 0.0
    %v803 = vand.u32 %v83, 4294901760
    %804 = vmatpush1.msra.mxu0 %v803
    %805 = vmatprep.subr.mxu0 0.0
    %v806 = vand.u32 %v84, 4294901760
    %807 = vmatpush1.msra.mxu0 %v806
    %808 = vmatprep.subr.mxu0 0.0
    %v809 = vand.u32 %v85, 4294901760
    %810 = vmatpush1.msra.mxu0 %v809
    %811 = vmatprep.subr.mxu0 0.0
    %812 = vmatpush1.msra.mxu0 0.0
    %813 = vmatprep.subr.mxu0 0.0
    %814 = vmatpush1.msra.mxu0 0.0
    %815 = vmatprep.subr.mxu0 0.0
    %816 = vmatpush1.msra.mxu0 0.0
    %817 = vmatprep.subr.mxu0 0.0
    %818 = vmatpush1.msra.mxu0 0.0
    %819 = vmatprep.subr.mxu0 0.0
    %820 = vmatpush1.msra.mxu0 0.0
    %821 = vmatprep.subr.mxu0 0.0
    %822 = vmatpush1.msra.mxu0 0.0
    %823 = vmatprep.subr.mxu0 0.0
    %824 = vmatpush1.msra.mxu0 0.0
    %825 = vmatprep.subr.mxu0 0.0
    %826 = vmatpush1.msra.mxu0 0.0
    %827 = vmatprep.subr.mxu0 0.0
    %828 = vmatpush1.msra.mxu0 0.0
    %829 = vmatprep.subr.mxu0 0.0
    %830 = vmatpush1.msra.mxu0 0.0
    %831 = vmatprep.subr.mxu0 0.0
    %832 = vmatpush1.msra.mxu0 0.0
    %833 = vmatprep.subr.mxu0 0.0
    %834 = vmatpush1.msra.mxu0 0.0
    %835 = vmatprep.subr.mxu0 0.0
    %836 = vmatpush1.msra.mxu0 0.0
    %837 = vmatprep.subr.mxu0 0.0
    %838 = vmatpush1.msra.mxu0 0.0
    %839 = vmatprep.subr.mxu0 0.0
    %840 = vmatpush1.msra.mxu0 0.0
    %841 = vmatprep.subr.mxu0 0.0
    %842 = vmatpush1.msra.mxu0 0.0
    %843 = vmatprep.subr.mxu0 0.0
    %844 = vmatpush1.msra.mxu0 0.0
    %845 = vmatprep.subr.mxu0 0.0
    %846 = vmatpush1.msra.mxu0 0.0
    %847 = vmatprep.subr.mxu0 0.0
    %848 = vmatpush1.msra.mxu0 0.0
    %849 = vmatprep.subr.mxu0 0.0
    %850 = vmatpush1.msra.mxu0 0.0
    %851 = vmatprep.subr.mxu0 0.0
    %852 = vmatpush1.msra.mxu0 0.0
    %853 = vmatprep.subr.mxu0 0.0
    %854 = vmatpush1.msra.mxu0 0.0
    %855 = vmatprep.subr.mxu0 0.0
    %856 = vmatpush1.msra.mxu0 0.0
    %857 = vmatprep.subr.mxu0 0.0
    %858 = vmatpush1.msra.mxu0 0.0
    %859 = vmatprep.subr.mxu0 0.0
    %860 = vmatpush1.msra.mxu0 0.0
    %861 = vmatprep.subr.mxu0 0.0
    %862 = vmatpush1.msra.mxu0 0.0
    %863 = vmatprep.subr.mxu0 0.0
    %864 = vmatpush1.msra.mxu0 0.0
    %865 = vmatprep.subr.mxu0 0.0
    %866 = vmatpush1.msra.mxu0 0.0
    %867 = vmatprep.mubr.f32.mxu0 0.0
    %v868 = vand.u32 %v547, 4294901760
    %v869 = vsub.f32 %v547, %v868
    %v870 = vand.u32 %v869, 4294901760
    %871 = vmatmul.mubr.f32.gmra.mrb[0].mxu0 %v870
    %v872 = vpop.f32.mrb[0].mxu0
    %v873 = vadd.f32 %v796, %v872
    %v874 = vpop.f32.mrb[0].mxu0
    %875 = vdwg.mxu0
    %876 = vmatprep.subr.mxu0 0.0
    %v877 = vand.u32 %v82, 4294901760
    %v878 = vsub.f32 %v82, %v877
    %v879 = vand.u32 %v878, 4294901760
    %880 = vmatpush1.msra.mxu0 %v879
    %881 = vmatprep.subr.mxu0 0.0
    %v882 = vand.u32 %v83, 4294901760
    %v883 = vsub.f32 %v83, %v882
    %v884 = vand.u32 %v883, 4294901760
    %885 = vmatpush1.msra.mxu0 %v884
    %886 = vmatprep.subr.mxu0 0.0
    %v887 = vand.u32 %v84, 4294901760
    %v888 = vsub.f32 %v84, %v887
    %v889 = vand.u32 %v888, 4294901760
    %890 = vmatpush1.msra.mxu0 %v889
    %891 = vmatprep.subr.mxu0 0.0
    %v892 = vand.u32 %v85, 4294901760
    %v893 = vsub.f32 %v85, %v892
    %v894 = vand.u32 %v893, 4294901760
    %895 = vmatpush1.msra.mxu0 %v894
    %896 = vmatprep.subr.mxu0 0.0
    %897 = vmatpush1.msra.mxu0 0.0
    %898 = vmatprep.subr.mxu0 0.0
    %899 = vmatpush1.msra.mxu0 0.0
    %900 = vmatprep.subr.mxu0 0.0
    %901 = vmatpush1.msra.mxu0 0.0
    %902 = vmatprep.subr.mxu0 0.0
    %903 = vmatpush1.msra.mxu0 0.0
    %904 = vmatprep.subr.mxu0 0.0
    %905 = vmatpush1.msra.mxu0 0.0
    %906 = vmatprep.subr.mxu0 0.0
    %907 = vmatpush1.msra.mxu0 0.0
    %908 = vmatprep.subr.mxu0 0.0
    %909 = vmatpush1.msra.mxu0 0.0
    %910 = vmatprep.subr.mxu0 0.0
    %911 = vmatpush1.msra.mxu0 0.0
    %912 = vmatprep.subr.mxu0 0.0
    %913 = vmatpush1.msra.mxu0 0.0
    %914 = vmatprep.subr.mxu0 0.0
    %915 = vmatpush1.msra.mxu0 0.0
    %916 = vmatprep.subr.mxu0 0.0
    %917 = vmatpush1.msra.mxu0 0.0
    %918 = vmatprep.subr.mxu0 0.0
    %919 = vmatpush1.msra.mxu0 0.0
    %920 = vmatprep.subr.mxu0 0.0
    %921 = vmatpush1.msra.mxu0 0.0
    %922 = vmatprep.subr.mxu0 0.0
    %923 = vmatpush1.msra.mxu0 0.0
    %924 = vmatprep.subr.mxu0 0.0
    %925 = vmatpush1.msra.mxu0 0.0
    %926 = vmatprep.subr.mxu0 0.0
    %927 = vmatpush1.msra.mxu0 0.0
    %928 = vmatprep.subr.mxu0 0.0
    %929 = vmatpush1.msra.mxu0 0.0
    %930 = vmatprep.subr.mxu0 0.0
    %931 = vmatpush1.msra.mxu0 0.0
    %932 = vmatprep.subr.mxu0 0.0
    %933 = vmatpush1.msra.mxu0 0.0
    %934 = vmatprep.subr.mxu0 0.0
    %935 = vmatpush1.msra.mxu0 0.0
    %936 = vmatprep.subr.mxu0 0.0
    %937 = vmatpush1.msra.mxu0 0.0
    %938 = vmatprep.subr.mxu0 0.0
    %939 = vmatpush1.msra.mxu0 0.0
    %940 = vmatprep.subr.mxu0 0.0
    %941 = vmatpush1.msra.mxu0 0.0
    %942 = vmatprep.subr.mxu0 0.0
    %943 = vmatpush1.msra.mxu0 0.0
    %944 = vmatprep.subr.mxu0 0.0
    %945 = vmatpush1.msra.mxu0 0.0
    %946 = vmatprep.subr.mxu0 0.0
    %947 = vmatpush1.msra.mxu0 0.0
    %948 = vmatprep.subr.mxu0 0.0
    %949 = vmatpush1.msra.mxu0 0.0
    %950 = vmatprep.subr.mxu0 0.0
    %951 = vmatpush1.msra.mxu0 0.0
    %952 = vmatprep.mubr.f32.mxu0 0.0
    %v953 = vand.u32 %v547, 4294901760
    %954 = vmatmul.mubr.f32.gmra.mrb[0].mxu0 %v953
    %v955 = vpop.f32.mrb[0].mxu0
    %v956 = vadd.f32 %v873, %v955
    %v957 = vpop.f32.mrb[0].mxu0
    %958 = vdwg.mxu0
    %959 = vmatprep.subr.mxu0 0.0
    %v960 = vand.u32 %v82, 4294901760
    %961 = vmatpush1.msra.mxu0 %v960
    %962 = vmatprep.subr.mxu0 0.0
    %v963 = vand.u32 %v83, 4294901760
    %964 = vmatpush1.msra.mxu0 %v963
    %965 = vmatprep.subr.mxu0 0.0
    %v966 = vand.u32 %v84, 4294901760
    %967 = vmatpush1.msra.mxu0 %v966
    %968 = vmatprep.subr.mxu0 0.0
    %v969 = vand.u32 %v85, 4294901760
    %970 = vmatpush1.msra.mxu0 %v969
    %971 = vmatprep.subr.mxu0 0.0
    %972 = vmatpush1.msra.mxu0 0.0
    %973 = vmatprep.subr.mxu0 0.0
    %974 = vmatpush1.msra.mxu0 0.0
    %975 = vmatprep.subr.mxu0 0.0
    %976 = vmatpush1.msra.mxu0 0.0
    %977 = vmatprep.subr.mxu0 0.0
    %978 = vmatpush1.msra.mxu0 0.0
    %979 = vmatprep.subr.mxu0 0.0
    %980 = vmatpush1.msra.mxu0 0.0
    %981 = vmatprep.subr.mxu0 0.0
    %982 = vmatpush1.msra.mxu0 0.0
    %983 = vmatprep.subr.mxu0 0.0
    %984 = vmatpush1.msra.mxu0 0.0
    %985 = vmatprep.subr.mxu0 0.0
    %986 = vmatpush1.msra.mxu0 0.0
    %987 = vmatprep.subr.mxu0 0.0
    %988 = vmatpush1.msra.mxu0 0.0
    %989 = vmatprep.subr.mxu0 0.0
    %990 = vmatpush1.msra.mxu0 0.0
    %991 = vmatprep.subr.mxu0 0.0
    %992 = vmatpush1.msra.mxu0 0.0
    %993 = vmatprep.subr.mxu0 0.0
    %994 = vmatpush1.msra.mxu0 0.0
    %995 = vmatprep.subr.mxu0 0.0
    %996 = vmatpush1.msra.mxu0 0.0
    %997 = vmatprep.subr.mxu0 0.0
    %998 = vmatpush1.msra.mxu0 0.0
    %999 = vmatprep.subr.mxu0 0.0
    %1000 = vmatpush1.msra.mxu0 0.0
    %1001 = vmatprep.subr.mxu0 0.0
    %1002 = vmatpush1.msra.mxu0 0.0
    %1003 = vmatprep.subr.mxu0 0.0
    %1004 = vmatpush1.msra.mxu0 0.0
    %1005 = vmatprep.subr.mxu0 0.0
    %1006 = vmatpush1.msra.mxu0 0.0
    %1007 = vmatprep.subr.mxu0 0.0
    %1008 = vmatpush1.msra.mxu0 0.0
    %1009 = vmatprep.subr.mxu0 0.0
    %1010 = vmatpush1.msra.mxu0 0.0
    %1011 = vmatprep.subr.mxu0 0.0
    %1012 = vmatpush1.msra.mxu0 0.0
    %1013 = vmatprep.subr.mxu0 0.0
    %1014 = vmatpush1.msra.mxu0 0.0
    %1015 = vmatprep.subr.mxu0 0.0
    %1016 = vmatpush1.msra.mxu0 0.0
    %1017 = vmatprep.subr.mxu0 0.0
    %1018 = vmatpush1.msra.mxu0 0.0
    %1019 = vmatprep.subr.mxu0 0.0
    %1020 = vmatpush1.msra.mxu0 0.0
    %1021 = vmatprep.subr.mxu0 0.0
    %1022 = vmatpush1.msra.mxu0 0.0
    %1023 = vmatprep.subr.mxu0 0.0
    %1024 = vmatpush1.msra.mxu0 0.0
    %1025 = vmatprep.subr.mxu0 0.0
    %1026 = vmatpush1.msra.mxu0 0.0
    %1027 = vmatprep.mubr.f32.mxu0 0.0
    %v1028 = vand.u32 %v547, 4294901760
    %1029 = vmatmul.mubr.f32.gmra.mrb[0].mxu0 %v1028
    %v1030 = vpop.f32.mrb[0].mxu0
    %v1031 = vadd.f32 %v956, %v1030
    %v1032 = vpop.f32.mrb[0].mxu0
    %1033 = vdwg.mxu0
    %v1034 = vsub.f32 0.0, %v1031
    %v1035 = vmul.f32 %v1034, 1.442695
    %v1036 = vpow.pop %v1035
    %v1037 = vadd.f32 %v1036, 1.0
    %v1038 = vrcp.pop %v1037
    %v1039 = vmul.f32 1.0, %v1038
    %v1040 = vmul.f32 %v77, %v1039
    %v1042 = vsel %vm92, %v1040, 0
    %1044 = vmatprep.subr.mxu0 0.0
    %v1045 = vand.u32 %v79, 4294901760
    %1046 = vmatpush1.msra.mxu0 %v1045
    %1047 = vmatprep.subr.mxu0 0.0
    %1048 = vmatpush1.msra.mxu0 0.0
    %1049 = vmatprep.subr.mxu0 0.0
    %1050 = vmatpush1.msra.mxu0 0.0
    %1051 = vmatprep.subr.mxu0 0.0
    %1052 = vmatpush1.msra.mxu0 0.0
    %1053 = vmatprep.subr.mxu0 0.0
    %1054 = vmatpush1.msra.mxu0 0.0
    %1055 = vmatprep.subr.mxu0 0.0
    %1056 = vmatpush1.msra.mxu0 0.0
    %1057 = vmatprep.subr.mxu0 0.0
    %1058 = vmatpush1.msra.mxu0 0.0
    %1059 = vmatprep.subr.mxu0 0.0
    %1060 = vmatpush1.msra.mxu0 0.0
    %1061 = vmatprep.subr.mxu0 0.0
    %1062 = vmatpush1.msra.mxu0 0.0
    %1063 = vmatprep.subr.mxu0 0.0
    %1064 = vmatpush1.msra.mxu0 0.0
    %1065 = vmatprep.subr.mxu0 0.0
    %1066 = vmatpush1.msra.mxu0 0.0
    %1067 = vmatprep.subr.mxu0 0.0
    %1068 = vmatpush1.msra.mxu0 0.0
    %1069 = vmatprep.subr.mxu0 0.0
    %1070 = vmatpush1.msra.mxu0 0.0
    %1071 = vmatprep.subr.mxu0 0.0
    %1072 = vmatpush1.msra.mxu0 0.0
    %1073 = vmatprep.subr.mxu0 0.0
    %1074 = vmatpush1.msra.mxu0 0.0
    %1075 = vmatprep.subr.mxu0 0.0
    %1076 = vmatpush1.msra.mxu0 0.0
    %1077 = vmatprep.subr.mxu0 0.0
    %1078 = vmatpush1.msra.mxu0 0.0
    %1079 = vmatprep.subr.mxu0 0.0
    %1080 = vmatpush1.msra.mxu0 0.0
    %1081 = vmatprep.subr.mxu0 0.0
    %1082 = vmatpush1.msra.mxu0 0.0
    %1083 = vmatprep.subr.mxu0 0.0
    %1084 = vmatpush1.msra.mxu0 0.0
    %1085 = vmatprep.subr.mxu0 0.0
    %1086 = vmatpush1.msra.mxu0 0.0
    %1087 = vmatprep.subr.mxu0 0.0
    %1088 = vmatpush1.msra.mxu0 0.0
    %1089 = vmatprep.subr.mxu0 0.0
    %1090 = vmatpush1.msra.mxu0 0.0
    %1091 = vmatprep.subr.mxu0 0.0
    %1092 = vmatpush1.msra.mxu0 0.0
    %1093 = vmatprep.subr.mxu0 0.0
    %1094 = vmatpush1.msra.mxu0 0.0
    %1095 = vmatprep.subr.mxu0 0.0
    %1096 = vmatpush1.msra.mxu0 0.0
    %1097 = vmatprep.subr.mxu0 0.0
    %1098 = vmatpush1.msra.mxu0 0.0
    %1099 = vmatprep.subr.mxu0 0.0
    %1100 = vmatpush1.msra.mxu0 0.0
    %1101 = vmatprep.subr.mxu0 0.0
    %1102 = vmatpush1.msra.mxu0 0.0
    %1103 = vmatprep.subr.mxu0 0.0
    %1104 = vmatpush1.msra.mxu0 0.0
    %1105 = vmatprep.subr.mxu0 0.0
    %1106 = vmatpush1.msra.mxu0 0.0
    %1107 = vmatprep.subr.mxu0 0.0
    %1108 = vmatpush1.msra.mxu0 0.0
    %1109 = vmatprep.mubr.f32.mxu0 0.0
    %v1110 = vand.u32 %v1042, 4294901760
    %v1111 = vsub.f32 %v1042, %v1110
    %v1112 = vand.u32 %v1111, 4294901760
    %v1113 = vsub.f32 %v1111, %v1112
    %v1114 = vand.u32 %v1113, 4294901760
    %1115 = vmatmul.mubr.f32.gmra.mrb[0].mxu0 %v1114
    %v1116 = vpop.f32.mrb[0].mxu0
    %v1117 = vadd.f32 %v81, %v1116
    %v1118 = vpop.f32.mrb[0].mxu0
    %1119 = vdwg.mxu0
    %1120 = vmatprep.subr.mxu0 0.0
    %v1121 = vand.u32 %v79, 4294901760
    %v1122 = vsub.f32 %v79, %v1121
    %v1123 = vand.u32 %v1122, 4294901760
    %v1124 = vsub.f32 %v1122, %v1123
    %v1125 = vand.u32 %v1124, 4294901760
    %1126 = vmatpush1.msra.mxu0 %v1125
    %1127 = vmatprep.subr.mxu0 0.0
    %1128 = vmatpush1.msra.mxu0 0.0
    %1129 = vmatprep.subr.mxu0 0.0
    %1130 = vmatpush1.msra.mxu0 0.0
    %1131 = vmatprep.subr.mxu0 0.0
    %1132 = vmatpush1.msra.mxu0 0.0
    %1133 = vmatprep.subr.mxu0 0.0
    %1134 = vmatpush1.msra.mxu0 0.0
    %1135 = vmatprep.subr.mxu0 0.0
    %1136 = vmatpush1.msra.mxu0 0.0
    %1137 = vmatprep.subr.mxu0 0.0
    %1138 = vmatpush1.msra.mxu0 0.0
    %1139 = vmatprep.subr.mxu0 0.0
    %1140 = vmatpush1.msra.mxu0 0.0
    %1141 = vmatprep.subr.mxu0 0.0
    %1142 = vmatpush1.msra.mxu0 0.0
    %1143 = vmatprep.subr.mxu0 0.0
    %1144 = vmatpush1.msra.mxu0 0.0
    %1145 = vmatprep.subr.mxu0 0.0
    %1146 = vmatpush1.msra.mxu0 0.0
    %1147 = vmatprep.subr.mxu0 0.0
    %1148 = vmatpush1.msra.mxu0 0.0
    %1149 = vmatprep.subr.mxu0 0.0
    %1150 = vmatpush1.msra.mxu0 0.0
    %1151 = vmatprep.subr.mxu0 0.0
    %1152 = vmatpush1.msra.mxu0 0.0
    %1153 = vmatprep.subr.mxu0 0.0
    %1154 = vmatpush1.msra.mxu0 0.0
    %1155 = vmatprep.subr.mxu0 0.0
    %1156 = vmatpush1.msra.mxu0 0.0
    %1157 = vmatprep.subr.mxu0 0.0
    %1158 = vmatpush1.msra.mxu0 0.0
    %1159 = vmatprep.subr.mxu0 0.0
    %1160 = vmatpush1.msra.mxu0 0.0
    %1161 = vmatprep.subr.mxu0 0.0
    %1162 = vmatpush1.msra.mxu0 0.0
    %1163 = vmatprep.subr.mxu0 0.0
    %1164 = vmatpush1.msra.mxu0 0.0
    %1165 = vmatprep.subr.mxu0 0.0
    %1166 = vmatpush1.msra.mxu0 0.0
    %1167 = vmatprep.subr.mxu0 0.0
    %1168 = vmatpush1.msra.mxu0 0.0
    %1169 = vmatprep.subr.mxu0 0.0
    %1170 = vmatpush1.msra.mxu0 0.0
    %1171 = vmatprep.subr.mxu0 0.0
    %1172 = vmatpush1.msra.mxu0 0.0
    %1173 = vmatprep.subr.mxu0 0.0
    %1174 = vmatpush1.msra.mxu0 0.0
    %1175 = vmatprep.subr.mxu0 0.0
    %1176 = vmatpush1.msra.mxu0 0.0
    %1177 = vmatprep.subr.mxu0 0.0
    %1178 = vmatpush1.msra.mxu0 0.0
    %1179 = vmatprep.subr.mxu0 0.0
    %1180 = vmatpush1.msra.mxu0 0.0
    %1181 = vmatprep.subr.mxu0 0.0
    %1182 = vmatpush1.msra.mxu0 0.0
    %1183 = vmatprep.subr.mxu0 0.0
    %1184 = vmatpush1.msra.mxu0 0.0
    %1185 = vmatprep.subr.mxu0 0.0
    %1186 = vmatpush1.msra.mxu0 0.0
    %1187 = vmatprep.subr.mxu0 0.0
    %1188 = vmatpush1.msra.mxu0 0.0
    %1189 = vmatprep.mubr.f32.mxu0 0.0
    %v1190 = vand.u32 %v1042, 4294901760
    %1191 = vmatmul.mubr.f32.gmra.mrb[0].mxu0 %v1190
    %v1192 = vpop.f32.mrb[0].mxu0
    %v1193 = vadd.f32 %v1117, %v1192
    %v1194 = vpop.f32.mrb[0].mxu0
    %1195 = vdwg.mxu0
    %1196 = vmatprep.subr.mxu0 0.0
    %v1197 = vand.u32 %v79, 4294901760
    %v1198 = vsub.f32 %v79, %v1197
    %1199 = vmatpush1.msra.mxu0 %v1198
    %1200 = vmatprep.subr.mxu0 0.0
    %1201 = vmatpush1.msra.mxu0 0.0
    %1202 = vmatprep.subr.mxu0 0.0
    %1203 = vmatpush1.msra.mxu0 0.0
    %1204 = vmatprep.subr.mxu0 0.0
    %1205 = vmatpush1.msra.mxu0 0.0
    %1206 = vmatprep.subr.mxu0 0.0
    %1207 = vmatpush1.msra.mxu0 0.0
    %1208 = vmatprep.subr.mxu0 0.0
    %1209 = vmatpush1.msra.mxu0 0.0
    %1210 = vmatprep.subr.mxu0 0.0
    %1211 = vmatpush1.msra.mxu0 0.0
    %1212 = vmatprep.subr.mxu0 0.0
    %1213 = vmatpush1.msra.mxu0 0.0
    %1214 = vmatprep.subr.mxu0 0.0
    %1215 = vmatpush1.msra.mxu0 0.0
    %1216 = vmatprep.subr.mxu0 0.0
    %1217 = vmatpush1.msra.mxu0 0.0
    %1218 = vmatprep.subr.mxu0 0.0
    %1219 = vmatpush1.msra.mxu0 0.0
    %1220 = vmatprep.subr.mxu0 0.0
    %1221 = vmatpush1.msra.mxu0 0.0
    %1222 = vmatprep.subr.mxu0 0.0
    %1223 = vmatpush1.msra.mxu0 0.0
    %1224 = vmatprep.subr.mxu0 0.0
    %1225 = vmatpush1.msra.mxu0 0.0
    %1226 = vmatprep.subr.mxu0 0.0
    %1227 = vmatpush1.msra.mxu0 0.0
    %1228 = vmatprep.subr.mxu0 0.0
    %1229 = vmatpush1.msra.mxu0 0.0
    %1230 = vmatprep.subr.mxu0 0.0
    %1231 = vmatpush1.msra.mxu0 0.0
    %1232 = vmatprep.subr.mxu0 0.0
    %1233 = vmatpush1.msra.mxu0 0.0
    %1234 = vmatprep.subr.mxu0 0.0
    %1235 = vmatpush1.msra.mxu0 0.0
    %1236 = vmatprep.subr.mxu0 0.0
    %1237 = vmatpush1.msra.mxu0 0.0
    %1238 = vmatprep.subr.mxu0 0.0
    %1239 = vmatpush1.msra.mxu0 0.0
    %1240 = vmatprep.subr.mxu0 0.0
    %1241 = vmatpush1.msra.mxu0 0.0
    %1242 = vmatprep.subr.mxu0 0.0
    %1243 = vmatpush1.msra.mxu0 0.0
    %1244 = vmatprep.subr.mxu0 0.0
    %1245 = vmatpush1.msra.mxu0 0.0
    %1246 = vmatprep.subr.mxu0 0.0
    %1247 = vmatpush1.msra.mxu0 0.0
    %1248 = vmatprep.subr.mxu0 0.0
    %1249 = vmatpush1.msra.mxu0 0.0
    %1250 = vmatprep.subr.mxu0 0.0
    %1251 = vmatpush1.msra.mxu0 0.0
    %1252 = vmatprep.subr.mxu0 0.0
    %1253 = vmatpush1.msra.mxu0 0.0
    %1254 = vmatprep.subr.mxu0 0.0
    %1255 = vmatpush1.msra.mxu0 0.0
    %1256 = vmatprep.subr.mxu0 0.0
    %1257 = vmatpush1.msra.mxu0 0.0
    %1258 = vmatprep.subr.mxu0 0.0
    %1259 = vmatpush1.msra.mxu0 0.0
    %1260 = vmatprep.subr.mxu0 0.0
    %1261 = vmatpush1.msra.mxu0 0.0
    %1262 = vmatprep.mubr.f32.mxu0 0.0
    %v1263 = vand.u32 %v1042, 4294901760
    %v1264 = vsub.f32 %v1042, %v1263
    %1265 = vmatmul.mubr.f32.gmra.mrb[0].mxu0 %v1264
    %v1266 = vpop.f32.mrb[0].mxu0
    %v1267 = vadd.f32 %v1193, %v1266
    %v1268 = vpop.f32.mrb[0].mxu0
    %1269 = vdwg.mxu0
    %1270 = vmatprep.subr.mxu0 0.0
    %v1271 = vand.u32 %v79, 4294901760
    %1272 = vmatpush1.msra.mxu0 %v1271
    %1273 = vmatprep.subr.mxu0 0.0
    %1274 = vmatpush1.msra.mxu0 0.0
    %1275 = vmatprep.subr.mxu0 0.0
    %1276 = vmatpush1.msra.mxu0 0.0
    %1277 = vmatprep.subr.mxu0 0.0
    %1278 = vmatpush1.msra.mxu0 0.0
    %1279 = vmatprep.subr.mxu0 0.0
    %1280 = vmatpush1.msra.mxu0 0.0
    %1281 = vmatprep.subr.mxu0 0.0
    %1282 = vmatpush1.msra.mxu0 0.0
    %1283 = vmatprep.subr.mxu0 0.0
    %1284 = vmatpush1.msra.mxu0 0.0
    %1285 = vmatprep.subr.mxu0 0.0
    %1286 = vmatpush1.msra.mxu0 0.0
    %1287 = vmatprep.subr.mxu0 0.0
    %1288 = vmatpush1.msra.mxu0 0.0
    %1289 = vmatprep.subr.mxu0 0.0
    %1290 = vmatpush1.msra.mxu0 0.0
    %1291 = vmatprep.subr.mxu0 0.0
    %1292 = vmatpush1.msra.mxu0 0.0
    %1293 = vmatprep.subr.mxu0 0.0
    %1294 = vmatpush1.msra.mxu0 0.0
    %1295 = vmatprep.subr.mxu0 0.0
    %1296 = vmatpush1.msra.mxu0 0.0
    %1297 = vmatprep.subr.mxu0 0.0
    %1298 = vmatpush1.msra.mxu0 0.0
    %1299 = vmatprep.subr.mxu0 0.0
    %1300 = vmatpush1.msra.mxu0 0.0
    %1301 = vmatprep.subr.mxu0 0.0
    %1302 = vmatpush1.msra.mxu0 0.0
    %1303 = vmatprep.subr.mxu0 0.0
    %1304 = vmatpush1.msra.mxu0 0.0
    %1305 = vmatprep.subr.mxu0 0.0
    %1306 = vmatpush1.msra.mxu0 0.0
    %1307 = vmatprep.subr.mxu0 0.0
    %1308 = vmatpush1.msra.mxu0 0.0
    %1309 = vmatprep.subr.mxu0 0.0
    %1310 = vmatpush1.msra.mxu0 0.0
    %1311 = vmatprep.subr.mxu0 0.0
    %1312 = vmatpush1.msra.mxu0 0.0
    %1313 = vmatprep.subr.mxu0 0.0
    %1314 = vmatpush1.msra.mxu0 0.0
    %1315 = vmatprep.subr.mxu0 0.0
    %1316 = vmatpush1.msra.mxu0 0.0
    %1317 = vmatprep.subr.mxu0 0.0
    %1318 = vmatpush1.msra.mxu0 0.0
    %1319 = vmatprep.subr.mxu0 0.0
    %1320 = vmatpush1.msra.mxu0 0.0
    %1321 = vmatprep.subr.mxu0 0.0
    %1322 = vmatpush1.msra.mxu0 0.0
    %1323 = vmatprep.subr.mxu0 0.0
    %1324 = vmatpush1.msra.mxu0 0.0
    %1325 = vmatprep.subr.mxu0 0.0
    %1326 = vmatpush1.msra.mxu0 0.0
    %1327 = vmatprep.subr.mxu0 0.0
    %1328 = vmatpush1.msra.mxu0 0.0
    %1329 = vmatprep.subr.mxu0 0.0
    %1330 = vmatpush1.msra.mxu0 0.0
    %1331 = vmatprep.subr.mxu0 0.0
    %1332 = vmatpush1.msra.mxu0 0.0
    %1333 = vmatprep.subr.mxu0 0.0
    %1334 = vmatpush1.msra.mxu0 0.0
    %1335 = vmatprep.mubr.f32.mxu0 0.0
    %v1336 = vand.u32 %v1042, 4294901760
    %v1337 = vsub.f32 %v1042, %v1336
    %v1338 = vand.u32 %v1337, 4294901760
    %1339 = vmatmul.mubr.f32.gmra.mrb[0].mxu0 %v1338
    %v1340 = vpop.f32.mrb[0].mxu0
    %v1341 = vadd.f32 %v1267, %v1340
    %v1342 = vpop.f32.mrb[0].mxu0
    %1343 = vdwg.mxu0
    %1344 = vmatprep.subr.mxu0 0.0
    %v1345 = vand.u32 %v79, 4294901760
    %v1346 = vsub.f32 %v79, %v1345
    %v1347 = vand.u32 %v1346, 4294901760
    %1348 = vmatpush1.msra.mxu0 %v1347
    %1349 = vmatprep.subr.mxu0 0.0
    %1350 = vmatpush1.msra.mxu0 0.0
    %1351 = vmatprep.subr.mxu0 0.0
    %1352 = vmatpush1.msra.mxu0 0.0
    %1353 = vmatprep.subr.mxu0 0.0
    %1354 = vmatpush1.msra.mxu0 0.0
    %1355 = vmatprep.subr.mxu0 0.0
    %1356 = vmatpush1.msra.mxu0 0.0
    %1357 = vmatprep.subr.mxu0 0.0
    %1358 = vmatpush1.msra.mxu0 0.0
    %1359 = vmatprep.subr.mxu0 0.0
    %1360 = vmatpush1.msra.mxu0 0.0
    %1361 = vmatprep.subr.mxu0 0.0
    %1362 = vmatpush1.msra.mxu0 0.0
    %1363 = vmatprep.subr.mxu0 0.0
    %1364 = vmatpush1.msra.mxu0 0.0
    %1365 = vmatprep.subr.mxu0 0.0
    %1366 = vmatpush1.msra.mxu0 0.0
    %1367 = vmatprep.subr.mxu0 0.0
    %1368 = vmatpush1.msra.mxu0 0.0
    %1369 = vmatprep.subr.mxu0 0.0
    %1370 = vmatpush1.msra.mxu0 0.0
    %1371 = vmatprep.subr.mxu0 0.0
    %1372 = vmatpush1.msra.mxu0 0.0
    %1373 = vmatprep.subr.mxu0 0.0
    %1374 = vmatpush1.msra.mxu0 0.0
    %1375 = vmatprep.subr.mxu0 0.0
    %1376 = vmatpush1.msra.mxu0 0.0
    %1377 = vmatprep.subr.mxu0 0.0
    %1378 = vmatpush1.msra.mxu0 0.0
    %1379 = vmatprep.subr.mxu0 0.0
    %1380 = vmatpush1.msra.mxu0 0.0
    %1381 = vmatprep.subr.mxu0 0.0
    %1382 = vmatpush1.msra.mxu0 0.0
    %1383 = vmatprep.subr.mxu0 0.0
    %1384 = vmatpush1.msra.mxu0 0.0
    %1385 = vmatprep.subr.mxu0 0.0
    %1386 = vmatpush1.msra.mxu0 0.0
    %1387 = vmatprep.subr.mxu0 0.0
    %1388 = vmatpush1.msra.mxu0 0.0
    %1389 = vmatprep.subr.mxu0 0.0
    %1390 = vmatpush1.msra.mxu0 0.0
    %1391 = vmatprep.subr.mxu0 0.0
    %1392 = vmatpush1.msra.mxu0 0.0
    %1393 = vmatprep.subr.mxu0 0.0
    %1394 = vmatpush1.msra.mxu0 0.0
    %1395 = vmatprep.subr.mxu0 0.0
    %1396 = vmatpush1.msra.mxu0 0.0
    %1397 = vmatprep.subr.mxu0 0.0
    %1398 = vmatpush1.msra.mxu0 0.0
    %1399 = vmatprep.subr.mxu0 0.0
    %1400 = vmatpush1.msra.mxu0 0.0
    %1401 = vmatprep.subr.mxu0 0.0
    %1402 = vmatpush1.msra.mxu0 0.0
    %1403 = vmatprep.subr.mxu0 0.0
    %1404 = vmatpush1.msra.mxu0 0.0
    %1405 = vmatprep.subr.mxu0 0.0
    %1406 = vmatpush1.msra.mxu0 0.0
    %1407 = vmatprep.subr.mxu0 0.0
    %1408 = vmatpush1.msra.mxu0 0.0
    %1409 = vmatprep.subr.mxu0 0.0
    %1410 = vmatpush1.msra.mxu0 0.0
    %1411 = vmatprep.mubr.f32.mxu0 0.0
    %v1412 = vand.u32 %v1042, 4294901760
    %1413 = vmatmul.mubr.f32.gmra.mrb[0].mxu0 %v1412
    %v1414 = vpop.f32.mrb[0].mxu0
    %v1415 = vadd.f32 %v1341, %v1414
    %v1416 = vpop.f32.mrb[0].mxu0
    %1417 = vdwg.mxu0
    %1418 = vmatprep.subr.mxu0 0.0
    %v1419 = vand.u32 %v79, 4294901760
    %1420 = vmatpush1.msra.mxu0 %v1419
    %1421 = vmatprep.subr.mxu0 0.0
    %1422 = vmatpush1.msra.mxu0 0.0
    %1423 = vmatprep.subr.mxu0 0.0
    %1424 = vmatpush1.msra.mxu0 0.0
    %1425 = vmatprep.subr.mxu0 0.0
    %1426 = vmatpush1.msra.mxu0 0.0
    %1427 = vmatprep.subr.mxu0 0.0
    %1428 = vmatpush1.msra.mxu0 0.0
    %1429 = vmatprep.subr.mxu0 0.0
    %1430 = vmatpush1.msra.mxu0 0.0
    %1431 = vmatprep.subr.mxu0 0.0
    %1432 = vmatpush1.msra.mxu0 0.0
    %1433 = vmatprep.subr.mxu0 0.0
    %1434 = vmatpush1.msra.mxu0 0.0
    %1435 = vmatprep.subr.mxu0 0.0
    %1436 = vmatpush1.msra.mxu0 0.0
    %1437 = vmatprep.subr.mxu0 0.0
    %1438 = vmatpush1.msra.mxu0 0.0
    %1439 = vmatprep.subr.mxu0 0.0
    %1440 = vmatpush1.msra.mxu0 0.0
    %1441 = vmatprep.subr.mxu0 0.0
    %1442 = vmatpush1.msra.mxu0 0.0
    %1443 = vmatprep.subr.mxu0 0.0
    %1444 = vmatpush1.msra.mxu0 0.0
    %1445 = vmatprep.subr.mxu0 0.0
    %1446 = vmatpush1.msra.mxu0 0.0
    %1447 = vmatprep.subr.mxu0 0.0
    %1448 = vmatpush1.msra.mxu0 0.0
    %1449 = vmatprep.subr.mxu0 0.0
    %1450 = vmatpush1.msra.mxu0 0.0
    %1451 = vmatprep.subr.mxu0 0.0
    %1452 = vmatpush1.msra.mxu0 0.0
    %1453 = vmatprep.subr.mxu0 0.0
    %1454 = vmatpush1.msra.mxu0 0.0
    %1455 = vmatprep.subr.mxu0 0.0
    %1456 = vmatpush1.msra.mxu0 0.0
    %1457 = vmatprep.subr.mxu0 0.0
    %1458 = vmatpush1.msra.mxu0 0.0
    %1459 = vmatprep.subr.mxu0 0.0
    %1460 = vmatpush1.msra.mxu0 0.0
    %1461 = vmatprep.subr.mxu0 0.0
    %1462 = vmatpush1.msra.mxu0 0.0
    %1463 = vmatprep.subr.mxu0 0.0
    %1464 = vmatpush1.msra.mxu0 0.0
    %1465 = vmatprep.subr.mxu0 0.0
    %1466 = vmatpush1.msra.mxu0 0.0
    %1467 = vmatprep.subr.mxu0 0.0
    %1468 = vmatpush1.msra.mxu0 0.0
    %1469 = vmatprep.subr.mxu0 0.0
    %1470 = vmatpush1.msra.mxu0 0.0
    %1471 = vmatprep.subr.mxu0 0.0
    %1472 = vmatpush1.msra.mxu0 0.0
    %1473 = vmatprep.subr.mxu0 0.0
    %1474 = vmatpush1.msra.mxu0 0.0
    %1475 = vmatprep.subr.mxu0 0.0
    %1476 = vmatpush1.msra.mxu0 0.0
    %1477 = vmatprep.subr.mxu0 0.0
    %1478 = vmatpush1.msra.mxu0 0.0
    %1479 = vmatprep.subr.mxu0 0.0
    %1480 = vmatpush1.msra.mxu0 0.0
    %1481 = vmatprep.subr.mxu0 0.0
    %1482 = vmatpush1.msra.mxu0 0.0
    %1483 = vmatprep.mubr.f32.mxu0 0.0
    %v1484 = vand.u32 %v1042, 4294901760
    %1485 = vmatmul.mubr.f32.gmra.mrb[0].mxu0 %v1484
    %v1486 = vpop.f32.mrb[0].mxu0
    %v1487 = vadd.f32 %v1415, %v1486
    %v1488 = vpop.f32.mrb[0].mxu0
    %1489 = vdwg.mxu0
    %vm1490 = vcmp.gt.f32.partialorder %v1487, 0.0
    %v1491 = vmul.f32 %v1487, 0.2
    %v1492 = vsel %vm1490, %v1487, %v1491
    %v1494 = vsel %vm545, %v1492, 0
    %1496 = vmatprep.subr.mxu0 0.0
    %v1497 = vand.u32 %v86, 4294901760
    %1498 = vmatpush1.msra.mxu0 %v1497
    %1499 = vmatprep.subr.mxu0 0.0
    %v1500 = vand.u32 %v87, 4294901760
    %1501 = vmatpush1.msra.mxu0 %v1500
    %1502 = vmatprep.subr.mxu0 0.0
    %v1503 = vand.u32 %v88, 4294901760
    %1504 = vmatpush1.msra.mxu0 %v1503
    %1505 = vmatprep.subr.mxu0 0.0
    %v1506 = vand.u32 %v89, 4294901760
    %1507 = vmatpush1.msra.mxu0 %v1506
    %1508 = vmatprep.subr.mxu0 0.0
    %1509 = vmatpush1.msra.mxu0 0.0
    %1510 = vmatprep.subr.mxu0 0.0
    %1511 = vmatpush1.msra.mxu0 0.0
    %1512 = vmatprep.subr.mxu0 0.0
    %1513 = vmatpush1.msra.mxu0 0.0
    %1514 = vmatprep.subr.mxu0 0.0
    %1515 = vmatpush1.msra.mxu0 0.0
    %1516 = vmatprep.subr.mxu0 0.0
    %1517 = vmatpush1.msra.mxu0 0.0
    %1518 = vmatprep.subr.mxu0 0.0
    %1519 = vmatpush1.msra.mxu0 0.0
    %1520 = vmatprep.subr.mxu0 0.0
    %1521 = vmatpush1.msra.mxu0 0.0
    %1522 = vmatprep.subr.mxu0 0.0
    %1523 = vmatpush1.msra.mxu0 0.0
    %1524 = vmatprep.subr.mxu0 0.0
    %1525 = vmatpush1.msra.mxu0 0.0
    %1526 = vmatprep.subr.mxu0 0.0
    %1527 = vmatpush1.msra.mxu0 0.0
    %1528 = vmatprep.subr.mxu0 0.0
    %1529 = vmatpush1.msra.mxu0 0.0
    %1530 = vmatprep.subr.mxu0 0.0
    %1531 = vmatpush1.msra.mxu0 0.0
    %1532 = vmatprep.subr.mxu0 0.0
    %1533 = vmatpush1.msra.mxu0 0.0
    %1534 = vmatprep.subr.mxu0 0.0
    %1535 = vmatpush1.msra.mxu0 0.0
    %1536 = vmatprep.subr.mxu0 0.0
    %1537 = vmatpush1.msra.mxu0 0.0
    %1538 = vmatprep.subr.mxu0 0.0
    %1539 = vmatpush1.msra.mxu0 0.0
    %1540 = vmatprep.subr.mxu0 0.0
    %1541 = vmatpush1.msra.mxu0 0.0
    %1542 = vmatprep.subr.mxu0 0.0
    %1543 = vmatpush1.msra.mxu0 0.0
    %1544 = vmatprep.subr.mxu0 0.0
    %1545 = vmatpush1.msra.mxu0 0.0
    %1546 = vmatprep.subr.mxu0 0.0
    %1547 = vmatpush1.msra.mxu0 0.0
    %1548 = vmatprep.subr.mxu0 0.0
    %1549 = vmatpush1.msra.mxu0 0.0
    %1550 = vmatprep.subr.mxu0 0.0
    %1551 = vmatpush1.msra.mxu0 0.0
    %1552 = vmatprep.subr.mxu0 0.0
    %1553 = vmatpush1.msra.mxu0 0.0
    %1554 = vmatprep.subr.mxu0 0.0
    %1555 = vmatpush1.msra.mxu0 0.0
    %1556 = vmatprep.subr.mxu0 0.0
    %1557 = vmatpush1.msra.mxu0 0.0
    %1558 = vmatprep.subr.mxu0 0.0
    %1559 = vmatpush1.msra.mxu0 0.0
    %1560 = vmatprep.subr.mxu0 0.0
    %1561 = vmatpush1.msra.mxu0 0.0
    %1562 = vmatprep.subr.mxu0 0.0
    %1563 = vmatpush1.msra.mxu0 0.0
    %1564 = vmatprep.mubr.f32.mxu0 0.0
    %v1565 = vand.u32 %v1494, 4294901760
    %v1566 = vsub.f32 %v1494, %v1565
    %v1567 = vand.u32 %v1566, 4294901760
    %v1568 = vsub.f32 %v1566, %v1567
    %v1569 = vand.u32 %v1568, 4294901760
    %1570 = vmatmul.mubr.f32.gmra.mrb[0].mxu0 %v1569
    %v1571 = vpop.f32.mrb[0].mxu0
    %v1572 = vadd.f32 %v91, %v1571
    %v1573 = vpop.f32.mrb[0].mxu0
    %1574 = vdwg.mxu0
    %1575 = vmatprep.subr.mxu0 0.0
    %v1576 = vand.u32 %v86, 4294901760
    %v1577 = vsub.f32 %v86, %v1576
    %v1578 = vand.u32 %v1577, 4294901760
    %v1579 = vsub.f32 %v1577, %v1578
    %v1580 = vand.u32 %v1579, 4294901760
    %1581 = vmatpush1.msra.mxu0 %v1580
    %1582 = vmatprep.subr.mxu0 0.0
    %v1583 = vand.u32 %v87, 4294901760
    %v1584 = vsub.f32 %v87, %v1583
    %v1585 = vand.u32 %v1584, 4294901760
    %v1586 = vsub.f32 %v1584, %v1585
    %v1587 = vand.u32 %v1586, 4294901760
    %1588 = vmatpush1.msra.mxu0 %v1587
    %1589 = vmatprep.subr.mxu0 0.0
    %v1590 = vand.u32 %v88, 4294901760
    %v1591 = vsub.f32 %v88, %v1590
    %v1592 = vand.u32 %v1591, 4294901760
    %v1593 = vsub.f32 %v1591, %v1592
    %v1594 = vand.u32 %v1593, 4294901760
    %1595 = vmatpush1.msra.mxu0 %v1594
    %1596 = vmatprep.subr.mxu0 0.0
    %v1597 = vand.u32 %v89, 4294901760
    %v1598 = vsub.f32 %v89, %v1597
    %v1599 = vand.u32 %v1598, 4294901760
    %v1600 = vsub.f32 %v1598, %v1599
    %v1601 = vand.u32 %v1600, 4294901760
    %1602 = vmatpush1.msra.mxu0 %v1601
    %1603 = vmatprep.subr.mxu0 0.0
    %1604 = vmatpush1.msra.mxu0 0.0
    %1605 = vmatprep.subr.mxu0 0.0
    %1606 = vmatpush1.msra.mxu0 0.0
    %1607 = vmatprep.subr.mxu0 0.0
    %1608 = vmatpush1.msra.mxu0 0.0
    %1609 = vmatprep.subr.mxu0 0.0
    %1610 = vmatpush1.msra.mxu0 0.0
    %1611 = vmatprep.subr.mxu0 0.0
    %1612 = vmatpush1.msra.mxu0 0.0
    %1613 = vmatprep.subr.mxu0 0.0
    %1614 = vmatpush1.msra.mxu0 0.0
    %1615 = vmatprep.subr.mxu0 0.0
    %1616 = vmatpush1.msra.mxu0 0.0
    %1617 = vmatprep.subr.mxu0 0.0
    %1618 = vmatpush1.msra.mxu0 0.0
    %1619 = vmatprep.subr.mxu0 0.0
    %1620 = vmatpush1.msra.mxu0 0.0
    %1621 = vmatprep.subr.mxu0 0.0
    %1622 = vmatpush1.msra.mxu0 0.0
    %1623 = vmatprep.subr.mxu0 0.0
    %1624 = vmatpush1.msra.mxu0 0.0
    %1625 = vmatprep.subr.mxu0 0.0
    %1626 = vmatpush1.msra.mxu0 0.0
    %1627 = vmatprep.subr.mxu0 0.0
    %1628 = vmatpush1.msra.mxu0 0.0
    %1629 = vmatprep.subr.mxu0 0.0
    %1630 = vmatpush1.msra.mxu0 0.0
    %1631 = vmatprep.subr.mxu0 0.0
    %1632 = vmatpush1.msra.mxu0 0.0
    %1633 = vmatprep.subr.mxu0 0.0
    %1634 = vmatpush1.msra.mxu0 0.0
    %1635 = vmatprep.subr.mxu0 0.0
    %1636 = vmatpush1.msra.mxu0 0.0
    %1637 = vmatprep.subr.mxu0 0.0
    %1638 = vmatpush1.msra.mxu0 0.0
    %1639 = vmatprep.subr.mxu0 0.0
    %1640 = vmatpush1.msra.mxu0 0.0
    %1641 = vmatprep.subr.mxu0 0.0
    %1642 = vmatpush1.msra.mxu0 0.0
    %1643 = vmatprep.subr.mxu0 0.0
    %1644 = vmatpush1.msra.mxu0 0.0
    %1645 = vmatprep.subr.mxu0 0.0
    %1646 = vmatpush1.msra.mxu0 0.0
    %1647 = vmatprep.subr.mxu0 0.0
    %1648 = vmatpush1.msra.mxu0 0.0
    %1649 = vmatprep.subr.mxu0 0.0
    %1650 = vmatpush1.msra.mxu0 0.0
    %1651 = vmatprep.subr.mxu0 0.0
    %1652 = vmatpush1.msra.mxu0 0.0
    %1653 = vmatprep.subr.mxu0 0.0
    %1654 = vmatpush1.msra.mxu0 0.0
    %1655 = vmatprep.subr.mxu0 0.0
    %1656 = vmatpush1.msra.mxu0 0.0
    %1657 = vmatprep.subr.mxu0 0.0
    %1658 = vmatpush1.msra.mxu0 0.0
    %1659 = vmatprep.mubr.f32.mxu0 0.0
    %v1660 = vand.u32 %v1494, 4294901760
    %1661 = vmatmul.mubr.f32.gmra.mrb[0].mxu0 %v1660
    %v1662 = vpop.f32.mrb[0].mxu0
    %v1663 = vadd.f32 %v1572, %v1662
    %v1664 = vpop.f32.mrb[0].mxu0
    %1665 = vdwg.mxu0
    %1666 = vmatprep.subr.mxu0 0.0
    %v1667 = vand.u32 %v86, 4294901760
    %v1668 = vsub.f32 %v86, %v1667
    %1669 = vmatpush1.msra.mxu0 %v1668
    %1670 = vmatprep.subr.mxu0 0.0
    %v1671 = vand.u32 %v87, 4294901760
    %v1672 = vsub.f32 %v87, %v1671
    %1673 = vmatpush1.msra.mxu0 %v1672
    %1674 = vmatprep.subr.mxu0 0.0
    %v1675 = vand.u32 %v88, 4294901760
    %v1676 = vsub.f32 %v88, %v1675
    %1677 = vmatpush1.msra.mxu0 %v1676
    %1678 = vmatprep.subr.mxu0 0.0
    %v1679 = vand.u32 %v89, 4294901760
    %v1680 = vsub.f32 %v89, %v1679
    %1681 = vmatpush1.msra.mxu0 %v1680
    %1682 = vmatprep.subr.mxu0 0.0
    %1683 = vmatpush1.msra.mxu0 0.0
    %1684 = vmatprep.subr.mxu0 0.0
    %1685 = vmatpush1.msra.mxu0 0.0
    %1686 = vmatprep.subr.mxu0 0.0
    %1687 = vmatpush1.msra.mxu0 0.0
    %1688 = vmatprep.subr.mxu0 0.0
    %1689 = vmatpush1.msra.mxu0 0.0
    %1690 = vmatprep.subr.mxu0 0.0
    %1691 = vmatpush1.msra.mxu0 0.0
    %1692 = vmatprep.subr.mxu0 0.0
    %1693 = vmatpush1.msra.mxu0 0.0
    %1694 = vmatprep.subr.mxu0 0.0
    %1695 = vmatpush1.msra.mxu0 0.0
    %1696 = vmatprep.subr.mxu0 0.0
    %1697 = vmatpush1.msra.mxu0 0.0
    %1698 = vmatprep.subr.mxu0 0.0
    %1699 = vmatpush1.msra.mxu0 0.0
    %1700 = vmatprep.subr.mxu0 0.0
    %1701 = vmatpush1.msra.mxu0 0.0
    %1702 = vmatprep.subr.mxu0 0.0
    %1703 = vmatpush1.msra.mxu0 0.0
    %1704 = vmatprep.subr.mxu0 0.0
    %1705 = vmatpush1.msra.mxu0 0.0
    %1706 = vmatprep.subr.mxu0 0.0
    %1707 = vmatpush1.msra.mxu0 0.0
    %1708 = vmatprep.subr.mxu0 0.0
    %1709 = vmatpush1.msra.mxu0 0.0
    %1710 = vmatprep.subr.mxu0 0.0
    %1711 = vmatpush1.msra.mxu0 0.0
    %1712 = vmatprep.subr.mxu0 0.0
    %1713 = vmatpush1.msra.mxu0 0.0
    %1714 = vmatprep.subr.mxu0 0.0
    %1715 = vmatpush1.msra.mxu0 0.0
    %1716 = vmatprep.subr.mxu0 0.0
    %1717 = vmatpush1.msra.mxu0 0.0
    %1718 = vmatprep.subr.mxu0 0.0
    %1719 = vmatpush1.msra.mxu0 0.0
    %1720 = vmatprep.subr.mxu0 0.0
    %1721 = vmatpush1.msra.mxu0 0.0
    %1722 = vmatprep.subr.mxu0 0.0
    %1723 = vmatpush1.msra.mxu0 0.0
    %1724 = vmatprep.subr.mxu0 0.0
    %1725 = vmatpush1.msra.mxu0 0.0
    %1726 = vmatprep.subr.mxu0 0.0
    %1727 = vmatpush1.msra.mxu0 0.0
    %1728 = vmatprep.subr.mxu0 0.0
    %1729 = vmatpush1.msra.mxu0 0.0
    %1730 = vmatprep.subr.mxu0 0.0
    %1731 = vmatpush1.msra.mxu0 0.0
    %1732 = vmatprep.subr.mxu0 0.0
    %1733 = vmatpush1.msra.mxu0 0.0
    %1734 = vmatprep.subr.mxu0 0.0
    %1735 = vmatpush1.msra.mxu0 0.0
    %1736 = vmatprep.subr.mxu0 0.0
    %1737 = vmatpush1.msra.mxu0 0.0
    %1738 = vmatprep.mubr.f32.mxu0 0.0
    %v1739 = vand.u32 %v1494, 4294901760
    %v1740 = vsub.f32 %v1494, %v1739
    %1741 = vmatmul.mubr.f32.gmra.mrb[0].mxu0 %v1740
    %v1742 = vpop.f32.mrb[0].mxu0
    %v1743 = vadd.f32 %v1663, %v1742
    %v1744 = vpop.f32.mrb[0].mxu0
    %1745 = vdwg.mxu0
    %1746 = vmatprep.subr.mxu0 0.0
    %v1747 = vand.u32 %v86, 4294901760
    %1748 = vmatpush1.msra.mxu0 %v1747
    %1749 = vmatprep.subr.mxu0 0.0
    %v1750 = vand.u32 %v87, 4294901760
    %1751 = vmatpush1.msra.mxu0 %v1750
    %1752 = vmatprep.subr.mxu0 0.0
    %v1753 = vand.u32 %v88, 4294901760
    %1754 = vmatpush1.msra.mxu0 %v1753
    %1755 = vmatprep.subr.mxu0 0.0
    %v1756 = vand.u32 %v89, 4294901760
    %1757 = vmatpush1.msra.mxu0 %v1756
    %1758 = vmatprep.subr.mxu0 0.0
    %1759 = vmatpush1.msra.mxu0 0.0
    %1760 = vmatprep.subr.mxu0 0.0
    %1761 = vmatpush1.msra.mxu0 0.0
    %1762 = vmatprep.subr.mxu0 0.0
    %1763 = vmatpush1.msra.mxu0 0.0
    %1764 = vmatprep.subr.mxu0 0.0
    %1765 = vmatpush1.msra.mxu0 0.0
    %1766 = vmatprep.subr.mxu0 0.0
    %1767 = vmatpush1.msra.mxu0 0.0
    %1768 = vmatprep.subr.mxu0 0.0
    %1769 = vmatpush1.msra.mxu0 0.0
    %1770 = vmatprep.subr.mxu0 0.0
    %1771 = vmatpush1.msra.mxu0 0.0
    %1772 = vmatprep.subr.mxu0 0.0
    %1773 = vmatpush1.msra.mxu0 0.0
    %1774 = vmatprep.subr.mxu0 0.0
    %1775 = vmatpush1.msra.mxu0 0.0
    %1776 = vmatprep.subr.mxu0 0.0
    %1777 = vmatpush1.msra.mxu0 0.0
    %1778 = vmatprep.subr.mxu0 0.0
    %1779 = vmatpush1.msra.mxu0 0.0
    %1780 = vmatprep.subr.mxu0 0.0
    %1781 = vmatpush1.msra.mxu0 0.0
    %1782 = vmatprep.subr.mxu0 0.0
    %1783 = vmatpush1.msra.mxu0 0.0
    %1784 = vmatprep.subr.mxu0 0.0
    %1785 = vmatpush1.msra.mxu0 0.0
    %1786 = vmatprep.subr.mxu0 0.0
    %1787 = vmatpush1.msra.mxu0 0.0
    %1788 = vmatprep.subr.mxu0 0.0
    %1789 = vmatpush1.msra.mxu0 0.0
    %1790 = vmatprep.subr.mxu0 0.0
    %1791 = vmatpush1.msra.mxu0 0.0
    %1792 = vmatprep.subr.mxu0 0.0
    %1793 = vmatpush1.msra.mxu0 0.0
    %1794 = vmatprep.subr.mxu0 0.0
    %1795 = vmatpush1.msra.mxu0 0.0
    %1796 = vmatprep.subr.mxu0 0.0
    %1797 = vmatpush1.msra.mxu0 0.0
    %1798 = vmatprep.subr.mxu0 0.0
    %1799 = vmatpush1.msra.mxu0 0.0
    %1800 = vmatprep.subr.mxu0 0.0
    %1801 = vmatpush1.msra.mxu0 0.0
    %1802 = vmatprep.subr.mxu0 0.0
    %1803 = vmatpush1.msra.mxu0 0.0
    %1804 = vmatprep.subr.mxu0 0.0
    %1805 = vmatpush1.msra.mxu0 0.0
    %1806 = vmatprep.subr.mxu0 0.0
    %1807 = vmatpush1.msra.mxu0 0.0
    %1808 = vmatprep.subr.mxu0 0.0
    %1809 = vmatpush1.msra.mxu0 0.0
    %1810 = vmatprep.subr.mxu0 0.0
    %1811 = vmatpush1.msra.mxu0 0.0
    %1812 = vmatprep.subr.mxu0 0.0
    %1813 = vmatpush1.msra.mxu0 0.0
    %1814 = vmatprep.mubr.f32.mxu0 0.0
    %v1815 = vand.u32 %v1494, 4294901760
    %v1816 = vsub.f32 %v1494, %v1815
    %v1817 = vand.u32 %v1816, 4294901760
    %1818 = vmatmul.mubr.f32.gmra.mrb[0].mxu0 %v1817
    %v1819 = vpop.f32.mrb[0].mxu0
    %v1820 = vadd.f32 %v1743, %v1819
    %v1821 = vpop.f32.mrb[0].mxu0
    %1822 = vdwg.mxu0
    %1823 = vmatprep.subr.mxu0 0.0
    %v1824 = vand.u32 %v86, 4294901760
    %v1825 = vsub.f32 %v86, %v1824
    %v1826 = vand.u32 %v1825, 4294901760
    %1827 = vmatpush1.msra.mxu0 %v1826
    %1828 = vmatprep.subr.mxu0 0.0
    %v1829 = vand.u32 %v87, 4294901760
    %v1830 = vsub.f32 %v87, %v1829
    %v1831 = vand.u32 %v1830, 4294901760
    %1832 = vmatpush1.msra.mxu0 %v1831
    %1833 = vmatprep.subr.mxu0 0.0
    %v1834 = vand.u32 %v88, 4294901760
    %v1835 = vsub.f32 %v88, %v1834
    %v1836 = vand.u32 %v1835, 4294901760
    %1837 = vmatpush1.msra.mxu0 %v1836
    %1838 = vmatprep.subr.mxu0 0.0
    %v1839 = vand.u32 %v89, 4294901760
    %v1840 = vsub.f32 %v89, %v1839
    %v1841 = vand.u32 %v1840, 4294901760
    %1842 = vmatpush1.msra.mxu0 %v1841
    %1843 = vmatprep.subr.mxu0 0.0
    %1844 = vmatpush1.msra.mxu0 0.0
    %1845 = vmatprep.subr.mxu0 0.0
    %1846 = vmatpush1.msra.mxu0 0.0
    %1847 = vmatprep.subr.mxu0 0.0
    %1848 = vmatpush1.msra.mxu0 0.0
    %1849 = vmatprep.subr.mxu0 0.0
    %1850 = vmatpush1.msra.mxu0 0.0
    %1851 = vmatprep.subr.mxu0 0.0
    %1852 = vmatpush1.msra.mxu0 0.0
    %1853 = vmatprep.subr.mxu0 0.0
    %1854 = vmatpush1.msra.mxu0 0.0
    %1855 = vmatprep.subr.mxu0 0.0
    %1856 = vmatpush1.msra.mxu0 0.0
    %1857 = vmatprep.subr.mxu0 0.0
    %1858 = vmatpush1.msra.mxu0 0.0
    %1859 = vmatprep.subr.mxu0 0.0
    %1860 = vmatpush1.msra.mxu0 0.0
    %1861 = vmatprep.subr.mxu0 0.0
    %1862 = vmatpush1.msra.mxu0 0.0
    %1863 = vmatprep.subr.mxu0 0.0
    %1864 = vmatpush1.msra.mxu0 0.0
    %1865 = vmatprep.subr.mxu0 0.0
    %1866 = vmatpush1.msra.mxu0 0.0
    %1867 = vmatprep.subr.mxu0 0.0
    %1868 = vmatpush1.msra.mxu0 0.0
    %1869 = vmatprep.subr.mxu0 0.0
    %1870 = vmatpush1.msra.mxu0 0.0
    %1871 = vmatprep.subr.mxu0 0.0
    %1872 = vmatpush1.msra.mxu0 0.0
    %1873 = vmatprep.subr.mxu0 0.0
    %1874 = vmatpush1.msra.mxu0 0.0
    %1875 = vmatprep.subr.mxu0 0.0
    %1876 = vmatpush1.msra.mxu0 0.0
    %1877 = vmatprep.subr.mxu0 0.0
    %1878 = vmatpush1.msra.mxu0 0.0
    %1879 = vmatprep.subr.mxu0 0.0
    %1880 = vmatpush1.msra.mxu0 0.0
    %1881 = vmatprep.subr.mxu0 0.0
    %1882 = vmatpush1.msra.mxu0 0.0
    %1883 = vmatprep.subr.mxu0 0.0
    %1884 = vmatpush1.msra.mxu0 0.0
    %1885 = vmatprep.subr.mxu0 0.0
    %1886 = vmatpush1.msra.mxu0 0.0
    %1887 = vmatprep.subr.mxu0 0.0
    %1888 = vmatpush1.msra.mxu0 0.0
    %1889 = vmatprep.subr.mxu0 0.0
    %1890 = vmatpush1.msra.mxu0 0.0
    %1891 = vmatprep.subr.mxu0 0.0
    %1892 = vmatpush1.msra.mxu0 0.0
    %1893 = vmatprep.subr.mxu0 0.0
    %1894 = vmatpush1.msra.mxu0 0.0
    %1895 = vmatprep.subr.mxu0 0.0
    %1896 = vmatpush1.msra.mxu0 0.0
    %1897 = vmatprep.subr.mxu0 0.0
    %1898 = vmatpush1.msra.mxu0 0.0
    %1899 = vmatprep.mubr.f32.mxu0 0.0
    %v1900 = vand.u32 %v1494, 4294901760
    %1901 = vmatmul.mubr.f32.gmra.mrb[0].mxu0 %v1900
    %v1902 = vpop.f32.mrb[0].mxu0
    %v1903 = vadd.f32 %v1820, %v1902
    %v1904 = vpop.f32.mrb[0].mxu0
    %1905 = vdwg.mxu0
    %1906 = vmatprep.subr.mxu0 0.0
    %v1907 = vand.u32 %v86, 4294901760
    %1908 = vmatpush1.msra.mxu0 %v1907
    %1909 = vmatprep.subr.mxu0 0.0
    %v1910 = vand.u32 %v87, 4294901760
    %1911 = vmatpush1.msra.mxu0 %v1910
    %1912 = vmatprep.subr.mxu0 0.0
    %v1913 = vand.u32 %v88, 4294901760
    %1914 = vmatpush1.msra.mxu0 %v1913
    %1915 = vmatprep.subr.mxu0 0.0
    %v1916 = vand.u32 %v89, 4294901760
    %1917 = vmatpush1.msra.mxu0 %v1916
    %1918 = vmatprep.subr.mxu0 0.0
    %1919 = vmatpush1.msra.mxu0 0.0
    %1920 = vmatprep.subr.mxu0 0.0
    %1921 = vmatpush1.msra.mxu0 0.0
    %1922 = vmatprep.subr.mxu0 0.0
    %1923 = vmatpush1.msra.mxu0 0.0
    %1924 = vmatprep.subr.mxu0 0.0
    %1925 = vmatpush1.msra.mxu0 0.0
    %1926 = vmatprep.subr.mxu0 0.0
    %1927 = vmatpush1.msra.mxu0 0.0
    %1928 = vmatprep.subr.mxu0 0.0
    %1929 = vmatpush1.msra.mxu0 0.0
    %1930 = vmatprep.subr.mxu0 0.0
    %1931 = vmatpush1.msra.mxu0 0.0
    %1932 = vmatprep.subr.mxu0 0.0
    %1933 = vmatpush1.msra.mxu0 0.0
    %1934 = vmatprep.subr.mxu0 0.0
    %1935 = vmatpush1.msra.mxu0 0.0
    %1936 = vmatprep.subr.mxu0 0.0
    %1937 = vmatpush1.msra.mxu0 0.0
    %1938 = vmatprep.subr.mxu0 0.0
    %1939 = vmatpush1.msra.mxu0 0.0
    %1940 = vmatprep.subr.mxu0 0.0
    %1941 = vmatpush1.msra.mxu0 0.0
    %1942 = vmatprep.subr.mxu0 0.0
    %1943 = vmatpush1.msra.mxu0 0.0
    %1944 = vmatprep.subr.mxu0 0.0
    %1945 = vmatpush1.msra.mxu0 0.0
    %1946 = vmatprep.subr.mxu0 0.0
    %1947 = vmatpush1.msra.mxu0 0.0
    %1948 = vmatprep.subr.mxu0 0.0
    %1949 = vmatpush1.msra.mxu0 0.0
    %1950 = vmatprep.subr.mxu0 0.0
    %1951 = vmatpush1.msra.mxu0 0.0
    %1952 = vmatprep.subr.mxu0 0.0
    %1953 = vmatpush1.msra.mxu0 0.0
    %1954 = vmatprep.subr.mxu0 0.0
    %1955 = vmatpush1.msra.mxu0 0.0
    %1956 = vmatprep.subr.mxu0 0.0
    %1957 = vmatpush1.msra.mxu0 0.0
    %1958 = vmatprep.subr.mxu0 0.0
    %1959 = vmatpush1.msra.mxu0 0.0
    %1960 = vmatprep.subr.mxu0 0.0
    %1961 = vmatpush1.msra.mxu0 0.0
    %1962 = vmatprep.subr.mxu0 0.0
    %1963 = vmatpush1.msra.mxu0 0.0
    %1964 = vmatprep.subr.mxu0 0.0
    %1965 = vmatpush1.msra.mxu0 0.0
    %1966 = vmatprep.subr.mxu0 0.0
    %1967 = vmatpush1.msra.mxu0 0.0
    %1968 = vmatprep.subr.mxu0 0.0
    %1969 = vmatpush1.msra.mxu0 0.0
    %1970 = vmatprep.subr.mxu0 0.0
    %1971 = vmatpush1.msra.mxu0 0.0
    %1972 = vmatprep.subr.mxu0 0.0
    %1973 = vmatpush1.msra.mxu0 0.0
    %1974 = vmatprep.mubr.f32.mxu0 0.0
    %v1975 = vand.u32 %v1494, 4294901760
    %1976 = vmatmul.mubr.f32.gmra.mrb[0].mxu0 %v1975
    %v1977 = vpop.f32.mrb[0].mxu0
    %v1978 = vadd.f32 %v1903, %v1977
    %v1979 = vpop.f32.mrb[0].mxu0
    %1980 = vdwg.mxu0
    %vm1981 = vcmask 58368
    %v1982 = vsel %vm1981, %v1978, -inf
    %1983 = vmax.xlane.f32.xlu0 %v1982
    %v1984 = vpop.xlane.xlu0 %1983
    %v1985 = vsub.f32 %v1978, %v1984
    %v1986 = vmul.f32 %v1985, 1.442695
    %v1987 = vpow.pop %v1986
    %v1988 = vsel %vm1981, %v1987, 0.0
    %1989 = vadd.xlane.f32.xlu0 %v1988
    %v1990 = vpop.xlane.xlu0 %1989
    %v1991 = vrcp.pop %v1990
    %v1992 = vmul.f32 %v1987, %v1991
    %1994 = vrot.lane.b32.xlu0 %v1992, 8
    %v1995 = vpop.permute.xlu0 %1994
    %1997 = vrot.lane.b32.xlu0 %v1992, 16
    %v1998 = vpop.permute.xlu0 %1997
    %2000 = vrot.lane.b32.xlu0 %v1992, 24
    %v2001 = vpop.permute.xlu0 %2000
    %2003 = vrot.lane.b32.xlu0 %v1992, 32
    %v2004 = vpop.permute.xlu0 %2003
    %2006 = vrot.lane.b32.xlu0 %v1992, 40
    %v2007 = vpop.permute.xlu0 %2006
    %2009 = vrot.lane.b32.xlu0 %v1992, 48
    %v2010 = vpop.permute.xlu0 %2009
    %2012 = vrot.lane.b32.xlu0 %v1992, 56
    %v2013 = vpop.permute.xlu0 %2012
    %2015 = vrot.lane.b32.xlu0 %v1992, 64
    %v2016 = vpop.permute.xlu0 %2015
    %2018 = vrot.lane.b32.xlu0 %v1992, 72
    %v2019 = vpop.permute.xlu0 %2018
    %2021 = vrot.lane.b32.xlu0 %v1992, 80
    %v2022 = vpop.permute.xlu0 %2021
    %2024 = vrot.lane.b32.xlu0 %v1992, 88
    %v2025 = vpop.permute.xlu0 %2024
    %2027 = vrot.lane.b32.xlu0 %v1992, 96
    %v2028 = vpop.permute.xlu0 %2027
    %2030 = vrot.lane.b32.xlu0 %v1992, 104
    %v2031 = vpop.permute.xlu0 %2030
    %2033 = vrot.lane.b32.xlu0 %v1992, 112
    %v2034 = vpop.permute.xlu0 %2033
    %2036 = vrot.lane.b32.xlu0 %v1992, 120
    %v2037 = vpop.permute.xlu0 %2036
    %v2039 = vsel %vm92, %v1992, %v1995
    %vm2040 = vcmask 130048
    %v2041 = vsel %vm2040, %v2039, %v1998
    %vm2042 = vcmask 195584
    %v2043 = vsel %vm2042, %v2041, %v2001
    %v2044 = vsel %vm545, %v2043, %v2004
    %vm2045 = vcmask 326656
    %v2046 = vsel %vm2045, %v2044, %v2007
    %vm2047 = vcmask 392192
    %v2048 = vsel %vm2047, %v2046, %v2010
    %vm2049 = vcmask 457728
    %v2050 = vsel %vm2049, %v2048, %v2013
    %vm2051 = vcmask 523264
    %v2052 = vsel %vm2051, %v2050, %v2016
    %vm2053 = vcmask 588800
    %v2054 = vsel %vm2053, %v2052, %v2019
    %vm2055 = vcmask 654336
    %v2056 = vsel %vm2055, %v2054, %v2022
    %vm2057 = vcmask 719872
    %v2058 = vsel %vm2057, %v2056, %v2025
    %vm2059 = vcmask 785408
    %v2060 = vsel %vm2059, %v2058, %v2028
    %vm2061 = vcmask 850944
    %v2062 = vsel %vm2061, %v2060, %v2031
    %vm2063 = vcmask 916480
    %v2064 = vsel %vm2063, %v2062, %v2034
    %vm2065 = vcmask 982016
    %v2066 = vsel %vm2065, %v2064, %v2037
    %v2067 = vmul.f32 %v38, %v2066
    %2068 = vst [vmem:[#allocation7] sm:$0x3] %v2067
    // Predicated region
    $region18: #{tpu_custom_call.1} parent=1 // pred_check
      _
    $region19: #{tpu_custom_call.1} parent=1 // pred_check_branch
      %2070 = sbr.rel (0) target = $region21
    $region20: #{tpu_custom_call.1} parent=1 // pred_region
      %s2072 = ssub.s32 32, 32
      %2073 = vsyncadd [#allocation4], %s2072
      %s2075 = sshll.u32 [#allocation7], 4
      %s2076 = int_to_ptr.vmem [resolvable:$true] %s2075
      %2078 = dma.vmem_to_hbm [thread:$0]  %s2076, 32, %s2, [#allocation4]
    $region21: #{tpu_custom_call.1} parent=1 // pred_fallthru
      _
    // Predicated region
    $region22: #{tpu_custom_call.1} parent=1 // pred_check
      _
    $region23: #{tpu_custom_call.1} parent=1 // pred_check_branch
      %2080 = sbr.rel (0) target = $region25
    $region24: #{tpu_custom_call.1} parent=1 // pred_region
      %2081 = dma.done [#allocation4], 32
    $region25: #{tpu_custom_call.1} parent=1 // pred_fallthru
      _
    %2082 = vsyncpa [#allocation3], 1
    %2083 = vsyncpa [#allocation6], 1
    %2084 = vsyncpa [#allocation4], 1

</llo_original>
